<compile_context>
chip_gen: v6e
topology: v6e:2x2x1
jax: 0.10.0
libtpu: 0.0.40
codegen_flags: <defaults>
</compile_context>

<pallas_src>
import jax
import jax.numpy as jnp
from jax import lax
from jax.experimental import pallas as pl
from jax.experimental.pallas import tpu as pltpu

# ----------------------------- hyper-params ---------------------------------
NUM_FIELDS = 10          # num_fields
K = 5                    # COLD_USER_THRESHOLD
EMB = 16                 # encoder.embedding_dim (== predictor emb dim here)
HID = 32                 # encoder.last_layer_dim
VOCAB = 100
B = 16                   # query batch


# ------------------------------- kernel -------------------------------------
def resus_kernel(ids_ref, vals_ref, ysup_ref,
                 enc_emb_ref, pred_emb_ref, w1_ref, b1_ref,
                 packed_ref, scal_ref, out_ref):
    # Layout (all 2-D, lane axis = flattened (K+1)*B or B; column r = kk*B + b):
    #   ids_ref   (F, R) int32     vals_ref (F, R) f32        R = (K+1)*B
    #   ysup_ref  (K, B) f32       (support labels, -1 = pad)
    #   enc_emb_ref / pred_emb_ref (EMB, VOCAB) f32           transposed tables
    #   w1_ref    (HID, EMB)       b1_ref (HID, 1)
    #   packed_ref (1, EMB + HID + EMB) = [wp | fc1w]
    #   scal_ref  SMEM (2 + 2K,)  = [bp, fc1b, adj_scale[0:K], adj_bias[0:K]]
    #   out_ref   (1, B)
    nf, r = ids_ref.shape
    kk, b = ysup_ref.shape
    emb, vocab = enc_emb_ref.shape
    hid = w1_ref.shape[0]

    ids = ids_ref[...]
    vals = vals_ref[...]
    ysup = ysup_ref[...]
    packed = packed_ref[...]
    wp_row = packed[:, :emb]            # (1, EMB)
    fc1_row = packed[:, emb:]           # (1, HID+EMB)

    # ---- fused embedding pooling: one-hot bag matrix -> MXU contraction -----
    viota = lax.broadcasted_iota(jnp.int32, (vocab, r), 0)
    bag = (viota == ids[0:1, :]).astype(jnp.float32) * vals[0:1, :]
    for f in range(1, nf):
        bag = bag + (viota == ids[f:f + 1, :]).astype(jnp.float32) * vals[f:f + 1, :]
    enc_p = jnp.dot(enc_emb_ref[...], bag,
                    preferred_element_type=jnp.float32)            # (EMB, R)
    pred_p = jnp.dot(pred_emb_ref[...], bag,
                     preferred_element_type=jnp.float32)           # (EMB, R)

    # ---- predictor logit per row (MXU) --------------------------------------
    logit_row = (jnp.dot(wp_row, pred_p, preferred_element_type=jnp.float32)
                 + scal_ref[0])                                    # (1, R)

    # ---- encoder hidden + g = [hidden | pool] (feature axis on sublanes) ----
    hidden = jnp.maximum(
        jnp.dot(w1_ref[...], enc_p, preferred_element_type=jnp.float32)
        + b1_ref[...], 0.0)                                        # (HID, R)
    g = jnp.concatenate([hidden, enc_p], axis=0)                   # (HID+EMB, R)

    g_q = g[:, 0:b]                                                # (HID+EMB, B)
    q_logit = logit_row[:, 0:b]                                    # (1, B)

    # ---- per-support score, masked softmax, residual correction -------------
    scores, deltas, valid = [], [], []
    for k in range(kk):
        lo, hi = (k + 1) * b, (k + 2) * b
        ys_k = ysup[k:k + 1, :]                                    # (1, B)
        dist_k = jnp.abs(g_q - g[:, lo:hi])                        # (HID+EMB, B)
        s_k = (jnp.dot(fc1_row, dist_k, preferred_element_type=jnp.float32)
               + scal_ref[1])                                      # (1, B)
        scores.append(jnp.where(ys_k == -1.0, -jnp.inf, s_k))
        deltas.append(ys_k - jax.nn.sigmoid(logit_row[:, lo:hi]))
        valid.append((ys_k != -1.0).astype(jnp.int32))

    m = scores[0]
    for k in range(1, kk):
        m = jnp.maximum(m, scores[k])
    l = jnp.zeros_like(m)
    acc = jnp.zeros_like(m)
    for k in range(kk):
        e_k = jnp.exp(scores[k] - m)
        l = l + e_k
        acc = acc + deltas[k] * e_k
    delta_y_hat = acc / l                                          # (1, B)

    # ---- AdjustLayer: select scale/bias by num_samples -----------------------
    ns = valid[0]
    for k in range(1, kk):
        ns = ns + valid[k]                                         # (1, B) int32
    scale_sel = jnp.zeros_like(m)
    bias_sel = jnp.zeros_like(m)
    for j in range(kk):
        scale_sel = jnp.where(ns == j + 1, scal_ref[2 + j], scale_sel)
        bias_sel = jnp.where(ns == j + 1, scal_ref[2 + kk + j], bias_sel)

    out_ref[...] = delta_y_hat * jnp.abs(scale_sel) + bias_sel + q_logit


# ------------------------------- wrapper -------------------------------------
def resus_forward(feature_ids, feature_vals, x_id_support, x_val_support,
                  y_support, params):
    k1 = K + 1
    r = k1 * B
    ids = jnp.concatenate([feature_ids[:, None, :], x_id_support], axis=1)     # (B, K+1, F)
    vals = jnp.concatenate([feature_vals[:, None, :], x_val_support], axis=1)  # (B, K+1, F)

    # lane-dense transposed layout: column index = kk*B + b
    ids_t = jnp.transpose(ids, (2, 1, 0)).reshape(NUM_FIELDS, r)               # (F, R) int32
    vals_t = jnp.transpose(vals, (2, 1, 0)).reshape(NUM_FIELDS, r)             # (F, R)
    ysup_t = y_support.T                                                       # (K, B)

    enc_t = params["enc_emb"].T            # (EMB, VOCAB)
    pred_t = params["pred_emb"].T          # (EMB, VOCAB)
    w1_t = params["w1"].T                  # (HID, EMB)
    b1_t = params["b1"].T                  # (HID, 1)
    packed = jnp.concatenate([params["wp"], params["fc1w"]], axis=1)           # (1, EMB+HID+EMB)
    scal = jnp.concatenate([params["bp"].reshape(-1),
                            params["fc1b"].reshape(-1),
                            params["adj_scale"].reshape(-1),
                            params["adj_bias"].reshape(-1)])                   # (2 + 2K,)

    vmem = pl.BlockSpec(memory_space=pltpu.MemorySpace.VMEM)
    smem = pl.BlockSpec(memory_space=pltpu.MemorySpace.SMEM)
    out = pl.pallas_call(
        resus_kernel,
        out_shape=jax.ShapeDtypeStruct((1, B), jnp.float32),
        in_specs=[vmem, vmem, vmem, vmem, vmem, vmem, vmem, vmem, smem],
        out_specs=vmem,
    )(ids_t, vals_t, ysup_t, enc_t, pred_t, w1_t, b1_t, packed, scal)
    return out[0]   # == prediction.squeeze()


# ------------------------ pure-JAX reference (for check) ---------------------
def resus_reference(feature_ids, feature_vals, x_id_support, x_val_support,
                    y_support, params):
    ids = jnp.concatenate([feature_ids[:, None, :], x_id_support], axis=1)
    vals = jnp.concatenate([feature_vals[:, None, :], x_val_support], axis=1)
    pool = lambda t: jnp.sum(t[ids] * vals[..., None], axis=2)
    enc_pool, pred_pool = pool(params["enc_emb"]), pool(params["pred_emb"])
    logits = jnp.sum(pred_pool * params["wp"], axis=-1) + params["bp"][0, 0]
    hidden = jax.nn.relu(jnp.einsum('bke,el->bkl', enc_pool, params["w1"])
                         + params["b1"])
    g_x = jnp.concatenate([hidden, enc_pool], axis=-1)
    dist = jnp.abs(g_x[:, 0:1, :] - g_x[:, 1:, :])
    score = jnp.sum(dist * params["fc1w"][0], axis=-1) + params["fc1b"][0, 0]
    score = jnp.where(y_support == -1.0, -jnp.inf, score)
    w = jax.nn.softmax(score, axis=1)
    delta_y = y_support - jax.nn.sigmoid(logits[:, 1:])
    dyh = jnp.sum(delta_y * w, axis=1)
    ns = jnp.sum((y_support != -1.0).astype(jnp.int32), axis=1)
    scale = jnp.abs(params["adj_scale"][0, ns - 1])
    bias = params["adj_bias"][0, ns - 1]
    return dyh * scale + bias + logits[:, 0]


# --------------------------------- main --------------------------------------
if __name__ == "__main__":
    key = jax.random.PRNGKey(0)
    ks = jax.random.split(key, 12)
    params = {
        "enc_emb": 0.1 * jax.random.normal(ks[0], (VOCAB, EMB), jnp.float32),
        "pred_emb": 0.1 * jax.random.normal(ks[1], (VOCAB, EMB), jnp.float32),
        "w1": 0.2 * jax.random.normal(ks[2], (EMB, HID), jnp.float32),
        "b1": 0.01 * jax.random.normal(ks[3], (1, HID), jnp.float32),
        "wp": 0.2 * jax.random.normal(ks[4], (1, EMB), jnp.float32),
        "bp": jnp.zeros((1, 1), jnp.float32),
        "fc1w": 0.2 * jax.random.normal(ks[5], (1, HID + EMB), jnp.float32),
        "fc1b": jnp.zeros((1, 1), jnp.float32),
        # AdjustLayer.__init__: scale = init_scale (3), bias = init_bias (0)
        "adj_scale": jnp.full((1, K), 3.0, jnp.float32),
        "adj_bias": jnp.zeros((1, K), jnp.float32),
    }

    feature_ids = jax.random.randint(ks[6], (B, NUM_FIELDS), 0, VOCAB, jnp.int32)
    feature_vals = jax.random.uniform(ks[7], (B, NUM_FIELDS), jnp.float32)
    x_id_support = jax.random.randint(ks[8], (B, K, NUM_FIELDS), 0, VOCAB, jnp.int32)
    x_val_support = jax.random.uniform(ks[9], (B, K, NUM_FIELDS), jnp.float32)
    labels = jax.random.bernoulli(ks[10], 0.5, (B, K)).astype(jnp.float32)
    # each user gets 1..K valid supports (prefix); the rest are padded with -1
    n_valid = jax.random.randint(ks[11], (B, 1), 1, K + 1, jnp.int32)
    y_support = jnp.where(jnp.arange(K)[None, :] < n_valid, labels, -1.0)

    pred_kernel = jax.jit(resus_forward)(feature_ids, feature_vals,
                                         x_id_support, x_val_support,
                                         y_support, params)
    jax.block_until_ready(pred_kernel)

    pred_ref = resus_reference(feature_ids, feature_vals, x_id_support,
                               x_val_support, y_support, params)
    assert pred_kernel.shape == (B,)
    # tolerance allows for the different (MXU vs gather/elementwise) f32
    # accumulation orders between the kernel and the reference
    assert jnp.allclose(pred_kernel, pred_ref, atol=1e-3, rtol=1e-3), \
        (pred_kernel, pred_ref)
    print("KERNEL_OK")
</pallas_src>

<mosaic_0001>
module attributes {stable_mosaic.version = 11 : i64} {
  func.func @resus_kernel(%arg0: memref<10x96xi32, #tpu.memory_space<vmem>>, %arg1: memref<10x96xf32, #tpu.memory_space<vmem>>, %arg2: memref<5x16xf32, #tpu.memory_space<vmem>>, %arg3: memref<16x100xf32, #tpu.memory_space<vmem>>, %arg4: memref<16x100xf32, #tpu.memory_space<vmem>>, %arg5: memref<32x16xf32, #tpu.memory_space<vmem>>, %arg6: memref<32x1xf32, #tpu.memory_space<vmem>>, %arg7: memref<1x64xf32, #tpu.memory_space<vmem>>, %arg8: memref<12xf32, #tpu.memory_space<smem>>, %arg9: memref<1x16xf32, #tpu.memory_space<vmem>>) attributes {dimension_semantics = [], scalar_prefetch = 0 : i64, scratch_operands = 0 : i64, tpu.core_type = #tpu.core_type<tc>} {
    %c0 = arith.constant 0 : index
    %c0_0 = arith.constant 0 : index
    %0 = vector.load %arg0[%c0, %c0_0] : memref<10x96xi32, #tpu.memory_space<vmem>>, vector<10x96xi32>
    %c0_1 = arith.constant 0 : index
    %c0_2 = arith.constant 0 : index
    %1 = vector.load %arg1[%c0_1, %c0_2] : memref<10x96xf32, #tpu.memory_space<vmem>>, vector<10x96xf32>
    %c0_3 = arith.constant 0 : index
    %c0_4 = arith.constant 0 : index
    %2 = vector.load %arg2[%c0_3, %c0_4] : memref<5x16xf32, #tpu.memory_space<vmem>>, vector<5x16xf32>
    %c0_5 = arith.constant 0 : index
    %c0_6 = arith.constant 0 : index
    %3 = vector.load %arg7[%c0_5, %c0_6] : memref<1x64xf32, #tpu.memory_space<vmem>>, vector<1x64xf32>
    %4 = vector.extract_strided_slice %3 {offsets = [0, 0], sizes = [1, 16], strides = [1, 1]} : vector<1x64xf32> to vector<1x16xf32>
    %5 = vector.extract_strided_slice %3 {offsets = [0, 16], sizes = [1, 48], strides = [1, 1]} : vector<1x64xf32> to vector<1x48xf32>
    %6 = tpu.iota {dimensions = array<i32: 0>} : vector<100x96xi32>
    %7 = vector.extract_strided_slice %0 {offsets = [0, 0], sizes = [1, 96], strides = [1, 1]} : vector<10x96xi32> to vector<1x96xi32>
    %8 = vector.broadcast %7 : vector<1x96xi32> to vector<100x96xi32>
    %9 = arith.cmpi eq, %6, %8 : vector<100x96xi32>
    %10 = arith.extui %9 : vector<100x96xi1> to vector<100x96xi32>
    %11 = arith.sitofp %10 : vector<100x96xi32> to vector<100x96xf32>
    %12 = vector.extract_strided_slice %1 {offsets = [0, 0], sizes = [1, 96], strides = [1, 1]} : vector<10x96xf32> to vector<1x96xf32>
    %13 = vector.broadcast %12 : vector<1x96xf32> to vector<100x96xf32>
    %14 = arith.mulf %11, %13 : vector<100x96xf32>
    %15 = vector.extract_strided_slice %0 {offsets = [1, 0], sizes = [1, 96], strides = [1, 1]} : vector<10x96xi32> to vector<1x96xi32>
    %16 = vector.broadcast %15 : vector<1x96xi32> to vector<100x96xi32>
    %17 = arith.cmpi eq, %6, %16 : vector<100x96xi32>
    %18 = arith.extui %17 : vector<100x96xi1> to vector<100x96xi32>
    %19 = arith.sitofp %18 : vector<100x96xi32> to vector<100x96xf32>
    %20 = vector.extract_strided_slice %1 {offsets = [1, 0], sizes = [1, 96], strides = [1, 1]} : vector<10x96xf32> to vector<1x96xf32>
    %21 = vector.broadcast %20 : vector<1x96xf32> to vector<100x96xf32>
    %22 = arith.mulf %19, %21 : vector<100x96xf32>
    %23 = arith.addf %14, %22 : vector<100x96xf32>
    %24 = vector.extract_strided_slice %0 {offsets = [2, 0], sizes = [1, 96], strides = [1, 1]} : vector<10x96xi32> to vector<1x96xi32>
    %25 = vector.broadcast %24 : vector<1x96xi32> to vector<100x96xi32>
    %26 = arith.cmpi eq, %6, %25 : vector<100x96xi32>
    %27 = arith.extui %26 : vector<100x96xi1> to vector<100x96xi32>
    %28 = arith.sitofp %27 : vector<100x96xi32> to vector<100x96xf32>
    %29 = vector.extract_strided_slice %1 {offsets = [2, 0], sizes = [1, 96], strides = [1, 1]} : vector<10x96xf32> to vector<1x96xf32>
    %30 = vector.broadcast %29 : vector<1x96xf32> to vector<100x96xf32>
    %31 = arith.mulf %28, %30 : vector<100x96xf32>
    %32 = arith.addf %23, %31 : vector<100x96xf32>
    %33 = vector.extract_strided_slice %0 {offsets = [3, 0], sizes = [1, 96], strides = [1, 1]} : vector<10x96xi32> to vector<1x96xi32>
    %34 = vector.broadcast %33 : vector<1x96xi32> to vector<100x96xi32>
    %35 = arith.cmpi eq, %6, %34 : vector<100x96xi32>
    %36 = arith.extui %35 : vector<100x96xi1> to vector<100x96xi32>
    %37 = arith.sitofp %36 : vector<100x96xi32> to vector<100x96xf32>
    %38 = vector.extract_strided_slice %1 {offsets = [3, 0], sizes = [1, 96], strides = [1, 1]} : vector<10x96xf32> to vector<1x96xf32>
    %39 = vector.broadcast %38 : vector<1x96xf32> to vector<100x96xf32>
    %40 = arith.mulf %37, %39 : vector<100x96xf32>
    %41 = arith.addf %32, %40 : vector<100x96xf32>
    %42 = vector.extract_strided_slice %0 {offsets = [4, 0], sizes = [1, 96], strides = [1, 1]} : vector<10x96xi32> to vector<1x96xi32>
    %43 = vector.broadcast %42 : vector<1x96xi32> to vector<100x96xi32>
    %44 = arith.cmpi eq, %6, %43 : vector<100x96xi32>
    %45 = arith.extui %44 : vector<100x96xi1> to vector<100x96xi32>
    %46 = arith.sitofp %45 : vector<100x96xi32> to vector<100x96xf32>
    %47 = vector.extract_strided_slice %1 {offsets = [4, 0], sizes = [1, 96], strides = [1, 1]} : vector<10x96xf32> to vector<1x96xf32>
    %48 = vector.broadcast %47 : vector<1x96xf32> to vector<100x96xf32>
    %49 = arith.mulf %46, %48 : vector<100x96xf32>
    %50 = arith.addf %41, %49 : vector<100x96xf32>
    %51 = vector.extract_strided_slice %0 {offsets = [5, 0], sizes = [1, 96], strides = [1, 1]} : vector<10x96xi32> to vector<1x96xi32>
    %52 = vector.broadcast %51 : vector<1x96xi32> to vector<100x96xi32>
    %53 = arith.cmpi eq, %6, %52 : vector<100x96xi32>
    %54 = arith.extui %53 : vector<100x96xi1> to vector<100x96xi32>
    %55 = arith.sitofp %54 : vector<100x96xi32> to vector<100x96xf32>
    %56 = vector.extract_strided_slice %1 {offsets = [5, 0], sizes = [1, 96], strides = [1, 1]} : vector<10x96xf32> to vector<1x96xf32>
    %57 = vector.broadcast %56 : vector<1x96xf32> to vector<100x96xf32>
    %58 = arith.mulf %55, %57 : vector<100x96xf32>
    %59 = arith.addf %50, %58 : vector<100x96xf32>
    %60 = vector.extract_strided_slice %0 {offsets = [6, 0], sizes = [1, 96], strides = [1, 1]} : vector<10x96xi32> to vector<1x96xi32>
    %61 = vector.broadcast %60 : vector<1x96xi32> to vector<100x96xi32>
    %62 = arith.cmpi eq, %6, %61 : vector<100x96xi32>
    %63 = arith.extui %62 : vector<100x96xi1> to vector<100x96xi32>
    %64 = arith.sitofp %63 : vector<100x96xi32> to vector<100x96xf32>
    %65 = vector.extract_strided_slice %1 {offsets = [6, 0], sizes = [1, 96], strides = [1, 1]} : vector<10x96xf32> to vector<1x96xf32>
    %66 = vector.broadcast %65 : vector<1x96xf32> to vector<100x96xf32>
    %67 = arith.mulf %64, %66 : vector<100x96xf32>
    %68 = arith.addf %59, %67 : vector<100x96xf32>
    %69 = vector.extract_strided_slice %0 {offsets = [7, 0], sizes = [1, 96], strides = [1, 1]} : vector<10x96xi32> to vector<1x96xi32>
    %70 = vector.broadcast %69 : vector<1x96xi32> to vector<100x96xi32>
    %71 = arith.cmpi eq, %6, %70 : vector<100x96xi32>
    %72 = arith.extui %71 : vector<100x96xi1> to vector<100x96xi32>
    %73 = arith.sitofp %72 : vector<100x96xi32> to vector<100x96xf32>
    %74 = vector.extract_strided_slice %1 {offsets = [7, 0], sizes = [1, 96], strides = [1, 1]} : vector<10x96xf32> to vector<1x96xf32>
    %75 = vector.broadcast %74 : vector<1x96xf32> to vector<100x96xf32>
    %76 = arith.mulf %73, %75 : vector<100x96xf32>
    %77 = arith.addf %68, %76 : vector<100x96xf32>
    %78 = vector.extract_strided_slice %0 {offsets = [8, 0], sizes = [1, 96], strides = [1, 1]} : vector<10x96xi32> to vector<1x96xi32>
    %79 = vector.broadcast %78 : vector<1x96xi32> to vector<100x96xi32>
    %80 = arith.cmpi eq, %6, %79 : vector<100x96xi32>
    %81 = arith.extui %80 : vector<100x96xi1> to vector<100x96xi32>
    %82 = arith.sitofp %81 : vector<100x96xi32> to vector<100x96xf32>
    %83 = vector.extract_strided_slice %1 {offsets = [8, 0], sizes = [1, 96], strides = [1, 1]} : vector<10x96xf32> to vector<1x96xf32>
    %84 = vector.broadcast %83 : vector<1x96xf32> to vector<100x96xf32>
    %85 = arith.mulf %82, %84 : vector<100x96xf32>
    %86 = arith.addf %77, %85 : vector<100x96xf32>
    %87 = vector.extract_strided_slice %0 {offsets = [9, 0], sizes = [1, 96], strides = [1, 1]} : vector<10x96xi32> to vector<1x96xi32>
    %88 = vector.broadcast %87 : vector<1x96xi32> to vector<100x96xi32>
    %89 = arith.cmpi eq, %6, %88 : vector<100x96xi32>
    %90 = arith.extui %89 : vector<100x96xi1> to vector<100x96xi32>
    %91 = arith.sitofp %90 : vector<100x96xi32> to vector<100x96xf32>
    %92 = vector.extract_strided_slice %1 {offsets = [9, 0], sizes = [1, 96], strides = [1, 1]} : vector<10x96xf32> to vector<1x96xf32>
    %93 = vector.broadcast %92 : vector<1x96xf32> to vector<100x96xf32>
    %94 = arith.mulf %91, %93 : vector<100x96xf32>
    %95 = arith.addf %86, %94 : vector<100x96xf32>
    %c0_7 = arith.constant 0 : index
    %c0_8 = arith.constant 0 : index
    %96 = vector.load %arg3[%c0_7, %c0_8] : memref<16x100xf32, #tpu.memory_space<vmem>>, vector<16x100xf32>
    %cst = arith.constant dense<0.000000e+00> : vector<16x96xf32>
    %97 = tpu.matmul %96, %95, %cst {dimension_numbers = #tpu.dot_dimension_numbers<[1], [0], [0], [1], [0, 0, 1, 1], [], []>} : vector<16x100xf32>, vector<100x96xf32>, vector<16x96xf32> -> vector<16x96xf32>
    %c0_9 = arith.constant 0 : index
    %c0_10 = arith.constant 0 : index
    %98 = vector.load %arg4[%c0_9, %c0_10] : memref<16x100xf32, #tpu.memory_space<vmem>>, vector<16x100xf32>
    %cst_11 = arith.constant dense<0.000000e+00> : vector<16x96xf32>
    %99 = tpu.matmul %98, %95, %cst_11 {dimension_numbers = #tpu.dot_dimension_numbers<[1], [0], [0], [1], [0, 0, 1, 1], [], []>} : vector<16x100xf32>, vector<100x96xf32>, vector<16x96xf32> -> vector<16x96xf32>
    %cst_12 = arith.constant dense<0.000000e+00> : vector<1x96xf32>
    %100 = tpu.matmul %4, %99, %cst_12 {dimension_numbers = #tpu.dot_dimension_numbers<[1], [0], [0], [1], [0, 0, 1, 1], [], []>} : vector<1x16xf32>, vector<16x96xf32>, vector<1x96xf32> -> vector<1x96xf32>
    %c0_13 = arith.constant 0 : index
    %101 = memref.load %arg8[%c0_13] : memref<12xf32, #tpu.memory_space<smem>>
    %102 = vector.broadcast %101 : f32 to vector<1x96xf32>
    %103 = arith.addf %100, %102 : vector<1x96xf32>
    %c0_14 = arith.constant 0 : index
    %c0_15 = arith.constant 0 : index
    %104 = vector.load %arg5[%c0_14, %c0_15] : memref<32x16xf32, #tpu.memory_space<vmem>>, vector<32x16xf32>
    %cst_16 = arith.constant dense<0.000000e+00> : vector<32x96xf32>
    %105 = tpu.matmul %104, %97, %cst_16 {dimension_numbers = #tpu.dot_dimension_numbers<[1], [0], [0], [1], [0, 0, 1, 1], [], []>} : vector<32x16xf32>, vector<16x96xf32>, vector<32x96xf32> -> vector<32x96xf32>
    %c0_17 = arith.constant 0 : index
    %c0_18 = arith.constant 0 : index
    %106 = vector.load %arg6[%c0_17, %c0_18] : memref<32x1xf32, #tpu.memory_space<vmem>>, vector<32x1xf32>
    %107 = vector.broadcast %106 : vector<32x1xf32> to vector<32x96xf32>
    %108 = arith.addf %105, %107 : vector<32x96xf32>
    %cst_19 = arith.constant 0.000000e+00 : f32
    %109 = vector.broadcast %cst_19 : f32 to vector<32x96xf32>
    %110 = arith.maximumf %108, %109 : vector<32x96xf32>
    %111 = tpu.concatenate %110, %97 in 0 : vector<32x96xf32>, vector<16x96xf32> -> vector<48x96xf32>
    %112 = vector.extract_strided_slice %111 {offsets = [0, 0], sizes = [48, 16], strides = [1, 1]} : vector<48x96xf32> to vector<48x16xf32>
    %113 = vector.extract_strided_slice %103 {offsets = [0, 0], sizes = [1, 16], strides = [1, 1]} : vector<1x96xf32> to vector<1x16xf32>
    %114 = vector.extract_strided_slice %2 {offsets = [0, 0], sizes = [1, 16], strides = [1, 1]} : vector<5x16xf32> to vector<1x16xf32>
    %115 = vector.extract_strided_slice %111 {offsets = [0, 16], sizes = [48, 16], strides = [1, 1]} : vector<48x96xf32> to vector<48x16xf32>
    %116 = arith.subf %112, %115 : vector<48x16xf32>
    %117 = math.absf %116 : vector<48x16xf32>
    %cst_20 = arith.constant dense<0.000000e+00> : vector<1x16xf32>
    %118 = tpu.matmul %5, %117, %cst_20 {dimension_numbers = #tpu.dot_dimension_numbers<[1], [0], [0], [1], [0, 0, 1, 1], [], []>} : vector<1x48xf32>, vector<48x16xf32>, vector<1x16xf32> -> vector<1x16xf32>
    %c1 = arith.constant 1 : index
    %119 = memref.load %arg8[%c1] : memref<12xf32, #tpu.memory_space<smem>>
    %120 = vector.broadcast %119 : f32 to vector<1x16xf32>
    %121 = arith.addf %118, %120 : vector<1x16xf32>
    %cst_21 = arith.constant -1.000000e+00 : f32
    %122 = vector.broadcast %cst_21 : f32 to vector<1x16xf32>
    %123 = arith.cmpf oeq, %114, %122 : vector<1x16xf32>
    %cst_22 = arith.constant 0xFF800000 : f32
    %124 = vector.broadcast %cst_22 : f32 to vector<1x16xf32>
    %125 = arith.select %123, %124, %121 : vector<1x16xi1>, vector<1x16xf32>
    %126 = vector.extract_strided_slice %103 {offsets = [0, 16], sizes = [1, 16], strides = [1, 1]} : vector<1x96xf32> to vector<1x16xf32>
    %127 = arith.negf %126 : vector<1x16xf32>
    %128 = math.exp %127 : vector<1x16xf32>
    %cst_23 = arith.constant 1.000000e+00 : f32
    %129 = vector.broadcast %cst_23 : f32 to vector<1x16xf32>
    %130 = arith.addf %129, %128 : vector<1x16xf32>
    %131 = arith.divf %129, %130 : vector<1x16xf32>
    %132 = arith.subf %114, %131 : vector<1x16xf32>
    %cst_24 = arith.constant -1.000000e+00 : f32
    %133 = vector.broadcast %cst_24 : f32 to vector<1x16xf32>
    %134 = arith.cmpf one, %114, %133 : vector<1x16xf32>
    %135 = arith.extui %134 : vector<1x16xi1> to vector<1x16xi32>
    %136 = vector.extract_strided_slice %2 {offsets = [1, 0], sizes = [1, 16], strides = [1, 1]} : vector<5x16xf32> to vector<1x16xf32>
    %137 = vector.extract_strided_slice %111 {offsets = [0, 32], sizes = [48, 16], strides = [1, 1]} : vector<48x96xf32> to vector<48x16xf32>
    %138 = arith.subf %112, %137 : vector<48x16xf32>
    %139 = math.absf %138 : vector<48x16xf32>
    %cst_25 = arith.constant dense<0.000000e+00> : vector<1x16xf32>
    %140 = tpu.matmul %5, %139, %cst_25 {dimension_numbers = #tpu.dot_dimension_numbers<[1], [0], [0], [1], [0, 0, 1, 1], [], []>} : vector<1x48xf32>, vector<48x16xf32>, vector<1x16xf32> -> vector<1x16xf32>
    %c1_26 = arith.constant 1 : index
    %141 = memref.load %arg8[%c1_26] : memref<12xf32, #tpu.memory_space<smem>>
    %142 = vector.broadcast %141 : f32 to vector<1x16xf32>
    %143 = arith.addf %140, %142 : vector<1x16xf32>
    %cst_27 = arith.constant -1.000000e+00 : f32
    %144 = vector.broadcast %cst_27 : f32 to vector<1x16xf32>
    %145 = arith.cmpf oeq, %136, %144 : vector<1x16xf32>
    %cst_28 = arith.constant 0xFF800000 : f32
    %146 = vector.broadcast %cst_28 : f32 to vector<1x16xf32>
    %147 = arith.select %145, %146, %143 : vector<1x16xi1>, vector<1x16xf32>
    %148 = vector.extract_strided_slice %103 {offsets = [0, 32], sizes = [1, 16], strides = [1, 1]} : vector<1x96xf32> to vector<1x16xf32>
    %149 = arith.negf %148 : vector<1x16xf32>
    %150 = math.exp %149 : vector<1x16xf32>
    %cst_29 = arith.constant 1.000000e+00 : f32
    %151 = vector.broadcast %cst_29 : f32 to vector<1x16xf32>
    %152 = arith.addf %151, %150 : vector<1x16xf32>
    %153 = arith.divf %151, %152 : vector<1x16xf32>
    %154 = arith.subf %136, %153 : vector<1x16xf32>
    %cst_30 = arith.constant -1.000000e+00 : f32
    %155 = vector.broadcast %cst_30 : f32 to vector<1x16xf32>
    %156 = arith.cmpf one, %136, %155 : vector<1x16xf32>
    %157 = arith.extui %156 : vector<1x16xi1> to vector<1x16xi32>
    %158 = vector.extract_strided_slice %2 {offsets = [2, 0], sizes = [1, 16], strides = [1, 1]} : vector<5x16xf32> to vector<1x16xf32>
    %159 = vector.extract_strided_slice %111 {offsets = [0, 48], sizes = [48, 16], strides = [1, 1]} : vector<48x96xf32> to vector<48x16xf32>
    %160 = arith.subf %112, %159 : vector<48x16xf32>
    %161 = math.absf %160 : vector<48x16xf32>
    %cst_31 = arith.constant dense<0.000000e+00> : vector<1x16xf32>
    %162 = tpu.matmul %5, %161, %cst_31 {dimension_numbers = #tpu.dot_dimension_numbers<[1], [0], [0], [1], [0, 0, 1, 1], [], []>} : vector<1x48xf32>, vector<48x16xf32>, vector<1x16xf32> -> vector<1x16xf32>
    %c1_32 = arith.constant 1 : index
    %163 = memref.load %arg8[%c1_32] : memref<12xf32, #tpu.memory_space<smem>>
    %164 = vector.broadcast %163 : f32 to vector<1x16xf32>
    %165 = arith.addf %162, %164 : vector<1x16xf32>
    %cst_33 = arith.constant -1.000000e+00 : f32
    %166 = vector.broadcast %cst_33 : f32 to vector<1x16xf32>
    %167 = arith.cmpf oeq, %158, %166 : vector<1x16xf32>
    %cst_34 = arith.constant 0xFF800000 : f32
    %168 = vector.broadcast %cst_34 : f32 to vector<1x16xf32>
    %169 = arith.select %167, %168, %165 : vector<1x16xi1>, vector<1x16xf32>
    %170 = vector.extract_strided_slice %103 {offsets = [0, 48], sizes = [1, 16], strides = [1, 1]} : vector<1x96xf32> to vector<1x16xf32>
    %171 = arith.negf %170 : vector<1x16xf32>
    %172 = math.exp %171 : vector<1x16xf32>
    %cst_35 = arith.constant 1.000000e+00 : f32
    %173 = vector.broadcast %cst_35 : f32 to vector<1x16xf32>
    %174 = arith.addf %173, %172 : vector<1x16xf32>
    %175 = arith.divf %173, %174 : vector<1x16xf32>
    %176 = arith.subf %158, %175 : vector<1x16xf32>
    %cst_36 = arith.constant -1.000000e+00 : f32
    %177 = vector.broadcast %cst_36 : f32 to vector<1x16xf32>
    %178 = arith.cmpf one, %158, %177 : vector<1x16xf32>
    %179 = arith.extui %178 : vector<1x16xi1> to vector<1x16xi32>
    %180 = vector.extract_strided_slice %2 {offsets = [3, 0], sizes = [1, 16], strides = [1, 1]} : vector<5x16xf32> to vector<1x16xf32>
    %181 = vector.extract_strided_slice %111 {offsets = [0, 64], sizes = [48, 16], strides = [1, 1]} : vector<48x96xf32> to vector<48x16xf32>
    %182 = arith.subf %112, %181 : vector<48x16xf32>
    %183 = math.absf %182 : vector<48x16xf32>
    %cst_37 = arith.constant dense<0.000000e+00> : vector<1x16xf32>
    %184 = tpu.matmul %5, %183, %cst_37 {dimension_numbers = #tpu.dot_dimension_numbers<[1], [0], [0], [1], [0, 0, 1, 1], [], []>} : vector<1x48xf32>, vector<48x16xf32>, vector<1x16xf32> -> vector<1x16xf32>
    %c1_38 = arith.constant 1 : index
    %185 = memref.load %arg8[%c1_38] : memref<12xf32, #tpu.memory_space<smem>>
    %186 = vector.broadcast %185 : f32 to vector<1x16xf32>
    %187 = arith.addf %184, %186 : vector<1x16xf32>
    %cst_39 = arith.constant -1.000000e+00 : f32
    %188 = vector.broadcast %cst_39 : f32 to vector<1x16xf32>
    %189 = arith.cmpf oeq, %180, %188 : vector<1x16xf32>
    %cst_40 = arith.constant 0xFF800000 : f32
    %190 = vector.broadcast %cst_40 : f32 to vector<1x16xf32>
    %191 = arith.select %189, %190, %187 : vector<1x16xi1>, vector<1x16xf32>
    %192 = vector.extract_strided_slice %103 {offsets = [0, 64], sizes = [1, 16], strides = [1, 1]} : vector<1x96xf32> to vector<1x16xf32>
    %193 = arith.negf %192 : vector<1x16xf32>
    %194 = math.exp %193 : vector<1x16xf32>
    %cst_41 = arith.constant 1.000000e+00 : f32
    %195 = vector.broadcast %cst_41 : f32 to vector<1x16xf32>
    %196 = arith.addf %195, %194 : vector<1x16xf32>
    %197 = arith.divf %195, %196 : vector<1x16xf32>
    %198 = arith.subf %180, %197 : vector<1x16xf32>
    %cst_42 = arith.constant -1.000000e+00 : f32
    %199 = vector.broadcast %cst_42 : f32 to vector<1x16xf32>
    %200 = arith.cmpf one, %180, %199 : vector<1x16xf32>
    %201 = arith.extui %200 : vector<1x16xi1> to vector<1x16xi32>
    %202 = vector.extract_strided_slice %2 {offsets = [4, 0], sizes = [1, 16], strides = [1, 1]} : vector<5x16xf32> to vector<1x16xf32>
    %203 = vector.extract_strided_slice %111 {offsets = [0, 80], sizes = [48, 16], strides = [1, 1]} : vector<48x96xf32> to vector<48x16xf32>
    %204 = arith.subf %112, %203 : vector<48x16xf32>
    %205 = math.absf %204 : vector<48x16xf32>
    %cst_43 = arith.constant dense<0.000000e+00> : vector<1x16xf32>
    %206 = tpu.matmul %5, %205, %cst_43 {dimension_numbers = #tpu.dot_dimension_numbers<[1], [0], [0], [1], [0, 0, 1, 1], [], []>} : vector<1x48xf32>, vector<48x16xf32>, vector<1x16xf32> -> vector<1x16xf32>
    %c1_44 = arith.constant 1 : index
    %207 = memref.load %arg8[%c1_44] : memref<12xf32, #tpu.memory_space<smem>>
    %208 = vector.broadcast %207 : f32 to vector<1x16xf32>
    %209 = arith.addf %206, %208 : vector<1x16xf32>
    %cst_45 = arith.constant -1.000000e+00 : f32
    %210 = vector.broadcast %cst_45 : f32 to vector<1x16xf32>
    %211 = arith.cmpf oeq, %202, %210 : vector<1x16xf32>
    %cst_46 = arith.constant 0xFF800000 : f32
    %212 = vector.broadcast %cst_46 : f32 to vector<1x16xf32>
    %213 = arith.select %211, %212, %209 : vector<1x16xi1>, vector<1x16xf32>
    %214 = vector.extract_strided_slice %103 {offsets = [0, 80], sizes = [1, 16], strides = [1, 1]} : vector<1x96xf32> to vector<1x16xf32>
    %215 = arith.negf %214 : vector<1x16xf32>
    %216 = math.exp %215 : vector<1x16xf32>
    %cst_47 = arith.constant 1.000000e+00 : f32
    %217 = vector.broadcast %cst_47 : f32 to vector<1x16xf32>
    %218 = arith.addf %217, %216 : vector<1x16xf32>
    %219 = arith.divf %217, %218 : vector<1x16xf32>
    %220 = arith.subf %202, %219 : vector<1x16xf32>
    %cst_48 = arith.constant -1.000000e+00 : f32
    %221 = vector.broadcast %cst_48 : f32 to vector<1x16xf32>
    %222 = arith.cmpf one, %202, %221 : vector<1x16xf32>
    %223 = arith.extui %222 : vector<1x16xi1> to vector<1x16xi32>
    %224 = arith.maximumf %125, %147 : vector<1x16xf32>
    %225 = arith.maximumf %224, %169 : vector<1x16xf32>
    %226 = arith.maximumf %225, %191 : vector<1x16xf32>
    %227 = arith.maximumf %226, %213 : vector<1x16xf32>
    %cst_49 = arith.constant 0.000000e+00 : f32
    %228 = vector.broadcast %cst_49 : f32 to vector<1x16xf32>
    %cst_50 = arith.constant 0.000000e+00 : f32
    %229 = vector.broadcast %cst_50 : f32 to vector<1x16xf32>
    %230 = arith.subf %125, %227 : vector<1x16xf32>
    %231 = math.exp %230 : vector<1x16xf32>
    %232 = arith.addf %228, %231 : vector<1x16xf32>
    %233 = arith.mulf %132, %231 : vector<1x16xf32>
    %234 = arith.addf %229, %233 : vector<1x16xf32>
    %235 = arith.subf %147, %227 : vector<1x16xf32>
    %236 = math.exp %235 : vector<1x16xf32>
    %237 = arith.addf %232, %236 : vector<1x16xf32>
    %238 = arith.mulf %154, %236 : vector<1x16xf32>
    %239 = arith.addf %234, %238 : vector<1x16xf32>
    %240 = arith.subf %169, %227 : vector<1x16xf32>
    %241 = math.exp %240 : vector<1x16xf32>
    %242 = arith.addf %237, %241 : vector<1x16xf32>
    %243 = arith.mulf %176, %241 : vector<1x16xf32>
    %244 = arith.addf %239, %243 : vector<1x16xf32>
    %245 = arith.subf %191, %227 : vector<1x16xf32>
    %246 = math.exp %245 : vector<1x16xf32>
    %247 = arith.addf %242, %246 : vector<1x16xf32>
    %248 = arith.mulf %198, %246 : vector<1x16xf32>
    %249 = arith.addf %244, %248 : vector<1x16xf32>
    %250 = arith.subf %213, %227 : vector<1x16xf32>
    %251 = math.exp %250 : vector<1x16xf32>
    %252 = arith.addf %247, %251 : vector<1x16xf32>
    %253 = arith.mulf %220, %251 : vector<1x16xf32>
    %254 = arith.addf %249, %253 : vector<1x16xf32>
    %255 = arith.divf %254, %252 : vector<1x16xf32>
    %256 = arith.addi %135, %157 : vector<1x16xi32>
    %257 = arith.addi %256, %179 : vector<1x16xi32>
    %258 = arith.addi %257, %201 : vector<1x16xi32>
    %259 = arith.addi %258, %223 : vector<1x16xi32>
    %cst_51 = arith.constant 0.000000e+00 : f32
    %260 = vector.broadcast %cst_51 : f32 to vector<1x16xf32>
    %cst_52 = arith.constant 0.000000e+00 : f32
    %261 = vector.broadcast %cst_52 : f32 to vector<1x16xf32>
    %c1_i32 = arith.constant 1 : i32
    %262 = vector.broadcast %c1_i32 : i32 to vector<1x16xi32>
    %263 = arith.cmpi eq, %259, %262 : vector<1x16xi32>
    %c2 = arith.constant 2 : index
    %264 = memref.load %arg8[%c2] : memref<12xf32, #tpu.memory_space<smem>>
    %265 = vector.broadcast %264 : f32 to vector<1x16xf32>
    %266 = arith.select %263, %265, %260 : vector<1x16xi1>, vector<1x16xf32>
    %c1_i32_53 = arith.constant 1 : i32
    %267 = vector.broadcast %c1_i32_53 : i32 to vector<1x16xi32>
    %268 = arith.cmpi eq, %259, %267 : vector<1x16xi32>
    %c7 = arith.constant 7 : index
    %269 = memref.load %arg8[%c7] : memref<12xf32, #tpu.memory_space<smem>>
    %270 = vector.broadcast %269 : f32 to vector<1x16xf32>
    %271 = arith.select %268, %270, %261 : vector<1x16xi1>, vector<1x16xf32>
    %c2_i32 = arith.constant 2 : i32
    %272 = vector.broadcast %c2_i32 : i32 to vector<1x16xi32>
    %273 = arith.cmpi eq, %259, %272 : vector<1x16xi32>
    %c3 = arith.constant 3 : index
    %274 = memref.load %arg8[%c3] : memref<12xf32, #tpu.memory_space<smem>>
    %275 = vector.broadcast %274 : f32 to vector<1x16xf32>
    %276 = arith.select %273, %275, %266 : vector<1x16xi1>, vector<1x16xf32>
    %c2_i32_54 = arith.constant 2 : i32
    %277 = vector.broadcast %c2_i32_54 : i32 to vector<1x16xi32>
    %278 = arith.cmpi eq, %259, %277 : vector<1x16xi32>
    %c8 = arith.constant 8 : index
    %279 = memref.load %arg8[%c8] : memref<12xf32, #tpu.memory_space<smem>>
    %280 = vector.broadcast %279 : f32 to vector<1x16xf32>
    %281 = arith.select %278, %280, %271 : vector<1x16xi1>, vector<1x16xf32>
    %c3_i32 = arith.constant 3 : i32
    %282 = vector.broadcast %c3_i32 : i32 to vector<1x16xi32>
    %283 = arith.cmpi eq, %259, %282 : vector<1x16xi32>
    %c4 = arith.constant 4 : index
    %284 = memref.load %arg8[%c4] : memref<12xf32, #tpu.memory_space<smem>>
    %285 = vector.broadcast %284 : f32 to vector<1x16xf32>
    %286 = arith.select %283, %285, %276 : vector<1x16xi1>, vector<1x16xf32>
    %c3_i32_55 = arith.constant 3 : i32
    %287 = vector.broadcast %c3_i32_55 : i32 to vector<1x16xi32>
    %288 = arith.cmpi eq, %259, %287 : vector<1x16xi32>
    %c9 = arith.constant 9 : index
    %289 = memref.load %arg8[%c9] : memref<12xf32, #tpu.memory_space<smem>>
    %290 = vector.broadcast %289 : f32 to vector<1x16xf32>
    %291 = arith.select %288, %290, %281 : vector<1x16xi1>, vector<1x16xf32>
    %c4_i32 = arith.constant 4 : i32
    %292 = vector.broadcast %c4_i32 : i32 to vector<1x16xi32>
    %293 = arith.cmpi eq, %259, %292 : vector<1x16xi32>
    %c5 = arith.constant 5 : index
    %294 = memref.load %arg8[%c5] : memref<12xf32, #tpu.memory_space<smem>>
    %295 = vector.broadcast %294 : f32 to vector<1x16xf32>
    %296 = arith.select %293, %295, %286 : vector<1x16xi1>, vector<1x16xf32>
    %c4_i32_56 = arith.constant 4 : i32
    %297 = vector.broadcast %c4_i32_56 : i32 to vector<1x16xi32>
    %298 = arith.cmpi eq, %259, %297 : vector<1x16xi32>
    %c10 = arith.constant 10 : index
    %299 = memref.load %arg8[%c10] : memref<12xf32, #tpu.memory_space<smem>>
    %300 = vector.broadcast %299 : f32 to vector<1x16xf32>
    %301 = arith.select %298, %300, %291 : vector<1x16xi1>, vector<1x16xf32>
    %c5_i32 = arith.constant 5 : i32
    %302 = vector.broadcast %c5_i32 : i32 to vector<1x16xi32>
    %303 = arith.cmpi eq, %259, %302 : vector<1x16xi32>
    %c6 = arith.constant 6 : index
    %304 = memref.load %arg8[%c6] : memref<12xf32, #tpu.memory_space<smem>>
    %305 = vector.broadcast %304 : f32 to vector<1x16xf32>
    %306 = arith.select %303, %305, %296 : vector<1x16xi1>, vector<1x16xf32>
    %c5_i32_57 = arith.constant 5 : i32
    %307 = vector.broadcast %c5_i32_57 : i32 to vector<1x16xi32>
    %308 = arith.cmpi eq, %259, %307 : vector<1x16xi32>
    %c11 = arith.constant 11 : index
    %309 = memref.load %arg8[%c11] : memref<12xf32, #tpu.memory_space<smem>>
    %310 = vector.broadcast %309 : f32 to vector<1x16xf32>
    %311 = arith.select %308, %310, %301 : vector<1x16xi1>, vector<1x16xf32>
    %312 = math.absf %306 : vector<1x16xf32>
    %313 = arith.mulf %255, %312 : vector<1x16xf32>
    %314 = arith.addf %313, %311 : vector<1x16xf32>
    %315 = arith.addf %314, %113 : vector<1x16xf32>
    %c0_58 = arith.constant 0 : index
    %c0_59 = arith.constant 0 : index
    %316 = vector.load %arg9[%c0_58, %c0_59] : memref<1x16xf32, #tpu.memory_space<vmem>>, vector<1x16xf32>
    tpu.vector_store %arg9[%c0_58, %c0_59], %315 {strides = array<i32>} : memref<1x16xf32, #tpu.memory_space<vmem>>, vector<1x16xf32>,
    return
  }
}

</mosaic_0001>

<llo_original>
// kernel: resus_forward.1
$region0: #{resus_forward.1}
  #allocation0 [shape = 'u32[]', space=smem, size = 0x4, offset = 0x4, fixed_abs, tag = 'smem constant byte address 0x4 - core index']
  #allocation1 [shape = 'u32[144,128]{1,0:T(1,128)}', space=vmem, size = 0x12000, scoped, tag = 'internal scratch']
  %s0 = inlined_call_operand.vmem [shape: s32[10,96], index: 0, kind: input, shape index: {}]
  %s1 = inlined_call_operand.vmem [shape: f32[10,96], index: 1, kind: input, shape index: {}]
  %s2 = inlined_call_operand.vmem [shape: f32[5,16], index: 2, kind: input, shape index: {}]
  %s3 = inlined_call_operand.vmem [shape: f32[16,100], index: 3, kind: input, shape index: {}]
  %s4 = inlined_call_operand.vmem [shape: f32[16,100], index: 4, kind: input, shape index: {}]
  %s5 = inlined_call_operand.vmem [shape: f32[32,16], index: 5, kind: input, shape index: {}]
  %s6 = inlined_call_operand.vmem [shape: f32[32,1], index: 6, kind: input, shape index: {}]
  %s7 = inlined_call_operand.vmem [shape: f32[1,64], index: 7, kind: input, shape index: {}]
  %s8 = inlined_call_operand.vmem [shape: f32[12], index: 8, kind: input, shape index: {}]
  %s9 = inlined_call_operand.hbm [shape: f32[1,16], index: 9, kind: output, shape index: {}]
  %s10 = sld [smem:[#allocation0]]
  $region50: #{resus_forward.1} parent=0
    _
  %s12 = ssub.s32 1, %s10
  %s13 = scalar_select 0, %s12, %s10
  $region1: #{resus_forward.1} parent=0
    #allocation2 [shape = 'u8[512]{0}', space=smem, size = 0x200, scoped, tag = 'input window, operand 8, single buffered']
    #allocation3 [shape = 's32[1]{0}', space=sflag, size = 0x4, scoped, tag = 'scoped memory for resus_forward.1']
    #allocation4 [shape = 's32[1]{0}', space=sflag, size = 0x4, scoped, tag = 'scoped memory for resus_forward.1']
    #allocation5 [shape = 'u8[512]{0}', space=vmem, size = 0x400, scoped, tag = 'output window, operand 0, single buffered']
    %14 = vsyncpa [#allocation4], 0
    %15 = vsyncpa [#allocation3], 0
    // Predicated region
    $region2: #{resus_forward.1} parent=1 // pred_check
      _
    $region3: #{resus_forward.1} parent=1 // pred_check_branch
      %17 = sbr.rel (0) target = $region5
    $region4: #{resus_forward.1} parent=1 // pred_region
      _
    $region5: #{resus_forward.1} parent=1 // pred_fallthru
      _
    // Predicated region
    $region6: #{resus_forward.1} parent=1 // pred_check
      _
    $region7: #{resus_forward.1} parent=1 // pred_check_branch
      %19 = sbr.rel (0) target = $region9
    $region8: #{resus_forward.1} parent=1 // pred_region
      _
    $region9: #{resus_forward.1} parent=1 // pred_fallthru
      _
    // Predicated region
    $region10: #{resus_forward.1} parent=1 // pred_check
      _
    $region11: #{resus_forward.1} parent=1 // pred_check_branch
      %21 = sbr.rel (0) target = $region13
    $region12: #{resus_forward.1} parent=1 // pred_region
      _
    $region13: #{resus_forward.1} parent=1 // pred_fallthru
      _
    // Predicated region
    $region14: #{resus_forward.1} parent=1 // pred_check
      _
    $region15: #{resus_forward.1} parent=1 // pred_check_branch
      %23 = sbr.rel (0) target = $region17
    $region16: #{resus_forward.1} parent=1 // pred_region
      _
    $region17: #{resus_forward.1} parent=1 // pred_fallthru
      _
    // Predicated region
    $region18: #{resus_forward.1} parent=1 // pred_check
      _
    $region19: #{resus_forward.1} parent=1 // pred_check_branch
      %25 = sbr.rel (0) target = $region21
    $region20: #{resus_forward.1} parent=1 // pred_region
      _
    $region21: #{resus_forward.1} parent=1 // pred_fallthru
      _
    // Predicated region
    $region22: #{resus_forward.1} parent=1 // pred_check
      _
    $region23: #{resus_forward.1} parent=1 // pred_check_branch
      %27 = sbr.rel (0) target = $region25
    $region24: #{resus_forward.1} parent=1 // pred_region
      _
    $region25: #{resus_forward.1} parent=1 // pred_fallthru
      _
    // Predicated region
    $region26: #{resus_forward.1} parent=1 // pred_check
      _
    $region27: #{resus_forward.1} parent=1 // pred_check_branch
      %29 = sbr.rel (0) target = $region29
    $region28: #{resus_forward.1} parent=1 // pred_region
      _
    $region29: #{resus_forward.1} parent=1 // pred_fallthru
      _
    // Predicated region
    $region30: #{resus_forward.1} parent=1 // pred_check
      _
    $region31: #{resus_forward.1} parent=1 // pred_check_branch
      %31 = sbr.rel (0) target = $region33
    $region32: #{resus_forward.1} parent=1 // pred_region
      _
    $region33: #{resus_forward.1} parent=1 // pred_fallthru
      _
    // Predicated region
    $region34: #{resus_forward.1} parent=1 // pred_check
      _
    $region35: #{resus_forward.1} parent=1 // pred_check_branch
      %33 = sbr.rel (0) target = $region37
    $region36: #{resus_forward.1} parent=1 // pred_region
      %s35 = ssub.s32 16, 16
      %36 = vsyncadd [#allocation4], %s35
      %s38 = sshll.u32 %s8, 4
      %s39 = int_to_ptr.vmem [resolvable:$true] %s38
      %41 = dma.vmem_to_smem %s39, 16, [#allocation2], [#allocation4]
    $region37: #{resus_forward.1} parent=1 // pred_fallthru
      _
    // Predicated region
    $region38: #{resus_forward.1} parent=1 // pred_check
      _
    $region39: #{resus_forward.1} parent=1 // pred_check_branch
      %43 = sbr.rel (0) target = $region41
    $region40: #{resus_forward.1} parent=1 // pred_region
      %44 = dma.done [#allocation4], 16
    $region41: #{resus_forward.1} parent=1 // pred_fallthru
      _
    %45 = sfence
    %v46 = vld [vmem:[%s0] sm:$0xff]
    %v47 = vld [vmem:[%s0 + $0x8] sm:$0x3]
    %v48 = vld [vmem:[%s1] sm:$0xff]
    %v49 = vld [vmem:[%s1 + $0x8] sm:$0x3]
    %v50 = vld [vmem:[%s2] sm:$0x1f]
    %v51 = vld [vmem:[%s7] sm:$0x1]
    %v52 = vlaneseq
    %v53 = vshrl.u32 %v52, 7
    %v54 = vadd.s32 %v53, 8
    %v55 = vadd.s32 %v53, 16
    %v56 = vadd.s32 %v53, 24
    %v57 = vadd.s32 %v53, 32
    %v58 = vadd.s32 %v53, 40
    %v59 = vadd.s32 %v53, 48
    %v60 = vadd.s32 %v53, 56
    %v61 = vadd.s32 %v53, 64
    %v62 = vadd.s32 %v53, 72
    %v63 = vadd.s32 %v53, 80
    %v64 = vadd.s32 %v53, 88
    %v65 = vadd.s32 %v53, 96
    %v66 = vlaneseq
    %v67 = vshrl.u32 %v66, 7
    %v68 = vsub.s32 0, %v67
    %v69 = vrot.slane %v46, %v68
    %vm70 = vcmp.eq.s32.totalorder %v53, %v69
    %vm71 = vcmp.eq.s32.totalorder %v54, %v69
    %vm72 = vcmp.eq.s32.totalorder %v55, %v69
    %vm73 = vcmp.eq.s32.totalorder %v56, %v69
    %vm74 = vcmp.eq.s32.totalorder %v57, %v69
    %vm75 = vcmp.eq.s32.totalorder %v58, %v69
    %vm76 = vcmp.eq.s32.totalorder %v59, %v69
    %vm77 = vcmp.eq.s32.totalorder %v60, %v69
    %vm78 = vcmp.eq.s32.totalorder %v61, %v69
    %vm79 = vcmp.eq.s32.totalorder %v62, %v69
    %vm80 = vcmp.eq.s32.totalorder %v63, %v69
    %vm81 = vcmp.eq.s32.totalorder %v64, %v69
    %vm82 = vcmp.eq.s32.totalorder %v65, %v69
    %v83 = vsel %vm70, 1, 0
    %v84 = vsel %vm71, 1, 0
    %v85 = vsel %vm72, 1, 0
    %v86 = vsel %vm73, 1, 0
    %v87 = vsel %vm74, 1, 0
    %v88 = vsel %vm75, 1, 0
    %v89 = vsel %vm76, 1, 0
    %v90 = vsel %vm77, 1, 0
    %v91 = vsel %vm78, 1, 0
    %v92 = vsel %vm79, 1, 0
    %v93 = vsel %vm80, 1, 0
    %v94 = vsel %vm81, 1, 0
    %v95 = vsel %vm82, 1, 0
    %v96 = vcvt.s32.f32 %v83
    %v97 = vcvt.s32.f32 %v84
    %v98 = vcvt.s32.f32 %v85
    %v99 = vcvt.s32.f32 %v86
    %v100 = vcvt.s32.f32 %v87
    %v101 = vcvt.s32.f32 %v88
    %v102 = vcvt.s32.f32 %v89
    %v103 = vcvt.s32.f32 %v90
    %v104 = vcvt.s32.f32 %v91
    %v105 = vcvt.s32.f32 %v92
    %v106 = vcvt.s32.f32 %v93
    %v107 = vcvt.s32.f32 %v94
    %v108 = vcvt.s32.f32 %v95
    %v109 = vlaneseq
    %v110 = vshrl.u32 %v109, 7
    %v111 = vsub.s32 0, %v110
    %v112 = vrot.slane %v48, %v111
    %v113 = vmul.f32 %v96, %v112
    %v114 = vmul.f32 %v97, %v112
    %v115 = vmul.f32 %v98, %v112
    %v116 = vmul.f32 %v99, %v112
    %v117 = vmul.f32 %v100, %v112
    %v118 = vmul.f32 %v101, %v112
    %v119 = vmul.f32 %v102, %v112
    %v120 = vmul.f32 %v103, %v112
    %v121 = vmul.f32 %v104, %v112
    %v122 = vmul.f32 %v105, %v112
    %v123 = vmul.f32 %v106, %v112
    %v124 = vmul.f32 %v107, %v112
    %v125 = vmul.f32 %v108, %v112
    %v126 = vlaneseq
    %v127 = vshrl.u32 %v126, 7
    %v128 = vsub.s32 1, %v127
    %v129 = vrot.slane %v46, %v128
    %vm130 = vcmp.eq.s32.totalorder %v53, %v129
    %vm131 = vcmp.eq.s32.totalorder %v54, %v129
    %vm132 = vcmp.eq.s32.totalorder %v55, %v129
    %vm133 = vcmp.eq.s32.totalorder %v56, %v129
    %vm134 = vcmp.eq.s32.totalorder %v57, %v129
    %vm135 = vcmp.eq.s32.totalorder %v58, %v129
    %vm136 = vcmp.eq.s32.totalorder %v59, %v129
    %vm137 = vcmp.eq.s32.totalorder %v60, %v129
    %vm138 = vcmp.eq.s32.totalorder %v61, %v129
    %vm139 = vcmp.eq.s32.totalorder %v62, %v129
    %vm140 = vcmp.eq.s32.totalorder %v63, %v129
    %vm141 = vcmp.eq.s32.totalorder %v64, %v129
    %vm142 = vcmp.eq.s32.totalorder %v65, %v129
    %v143 = vsel %vm130, 1, 0
    %v144 = vsel %vm131, 1, 0
    %v145 = vsel %vm132, 1, 0
    %v146 = vsel %vm133, 1, 0
    %v147 = vsel %vm134, 1, 0
    %v148 = vsel %vm135, 1, 0
    %v149 = vsel %vm136, 1, 0
    %v150 = vsel %vm137, 1, 0
    %v151 = vsel %vm138, 1, 0
    %v152 = vsel %vm139, 1, 0
    %v153 = vsel %vm140, 1, 0
    %v154 = vsel %vm141, 1, 0
    %v155 = vsel %vm142, 1, 0
    %v156 = vcvt.s32.f32 %v143
    %v157 = vcvt.s32.f32 %v144
    %v158 = vcvt.s32.f32 %v145
    %v159 = vcvt.s32.f32 %v146
    %v160 = vcvt.s32.f32 %v147
    %v161 = vcvt.s32.f32 %v148
    %v162 = vcvt.s32.f32 %v149
    %v163 = vcvt.s32.f32 %v150
    %v164 = vcvt.s32.f32 %v151
    %v165 = vcvt.s32.f32 %v152
    %v166 = vcvt.s32.f32 %v153
    %v167 = vcvt.s32.f32 %v154
    %v168 = vcvt.s32.f32 %v155
    %v169 = vlaneseq
    %v170 = vshrl.u32 %v169, 7
    %v171 = vsub.s32 1, %v170
    %v172 = vrot.slane %v48, %v171
    %v173 = vmul.f32 %v156, %v172
    %v174 = vmul.f32 %v157, %v172
    %v175 = vmul.f32 %v158, %v172
    %v176 = vmul.f32 %v159, %v172
    %v177 = vmul.f32 %v160, %v172
    %v178 = vmul.f32 %v161, %v172
    %v179 = vmul.f32 %v162, %v172
    %v180 = vmul.f32 %v163, %v172
    %v181 = vmul.f32 %v164, %v172
    %v182 = vmul.f32 %v165, %v172
    %v183 = vmul.f32 %v166, %v172
    %v184 = vmul.f32 %v167, %v172
    %v185 = vmul.f32 %v168, %v172
    %v186 = vadd.f32 %v113, %v173
    %v187 = vadd.f32 %v114, %v174
    %v188 = vadd.f32 %v115, %v175
    %v189 = vadd.f32 %v116, %v176
    %v190 = vadd.f32 %v117, %v177
    %v191 = vadd.f32 %v118, %v178
    %v192 = vadd.f32 %v119, %v179
    %v193 = vadd.f32 %v120, %v180
    %v194 = vadd.f32 %v121, %v181
    %v195 = vadd.f32 %v122, %v182
    %v196 = vadd.f32 %v123, %v183
    %v197 = vadd.f32 %v124, %v184
    %v198 = vadd.f32 %v125, %v185
    %v199 = vlaneseq
    %v200 = vshrl.u32 %v199, 7
    %v201 = vsub.s32 2, %v200
    %v202 = vrot.slane %v46, %v201
    %vm203 = vcmp.eq.s32.totalorder %v53, %v202
    %vm204 = vcmp.eq.s32.totalorder %v54, %v202
    %vm205 = vcmp.eq.s32.totalorder %v55, %v202
    %vm206 = vcmp.eq.s32.totalorder %v56, %v202
    %vm207 = vcmp.eq.s32.totalorder %v57, %v202
    %vm208 = vcmp.eq.s32.totalorder %v58, %v202
    %vm209 = vcmp.eq.s32.totalorder %v59, %v202
    %vm210 = vcmp.eq.s32.totalorder %v60, %v202
    %vm211 = vcmp.eq.s32.totalorder %v61, %v202
    %vm212 = vcmp.eq.s32.totalorder %v62, %v202
    %vm213 = vcmp.eq.s32.totalorder %v63, %v202
    %vm214 = vcmp.eq.s32.totalorder %v64, %v202
    %vm215 = vcmp.eq.s32.totalorder %v65, %v202
    %v216 = vsel %vm203, 1, 0
    %v217 = vsel %vm204, 1, 0
    %v218 = vsel %vm205, 1, 0
    %v219 = vsel %vm206, 1, 0
    %v220 = vsel %vm207, 1, 0
    %v221 = vsel %vm208, 1, 0
    %v222 = vsel %vm209, 1, 0
    %v223 = vsel %vm210, 1, 0
    %v224 = vsel %vm211, 1, 0
    %v225 = vsel %vm212, 1, 0
    %v226 = vsel %vm213, 1, 0
    %v227 = vsel %vm214, 1, 0
    %v228 = vsel %vm215, 1, 0
    %v229 = vcvt.s32.f32 %v216
    %v230 = vcvt.s32.f32 %v217
    %v231 = vcvt.s32.f32 %v218
    %v232 = vcvt.s32.f32 %v219
    %v233 = vcvt.s32.f32 %v220
    %v234 = vcvt.s32.f32 %v221
    %v235 = vcvt.s32.f32 %v222
    %v236 = vcvt.s32.f32 %v223
    %v237 = vcvt.s32.f32 %v224
    %v238 = vcvt.s32.f32 %v225
    %v239 = vcvt.s32.f32 %v226
    %v240 = vcvt.s32.f32 %v227
    %v241 = vcvt.s32.f32 %v228
    %v242 = vlaneseq
    %v243 = vshrl.u32 %v242, 7
    %v244 = vsub.s32 2, %v243
    %v245 = vrot.slane %v48, %v244
    %v246 = vmul.f32 %v229, %v245
    %v247 = vmul.f32 %v230, %v245
    %v248 = vmul.f32 %v231, %v245
    %v249 = vmul.f32 %v232, %v245
    %v250 = vmul.f32 %v233, %v245
    %v251 = vmul.f32 %v234, %v245
    %v252 = vmul.f32 %v235, %v245
    %v253 = vmul.f32 %v236, %v245
    %v254 = vmul.f32 %v237, %v245
    %v255 = vmul.f32 %v238, %v245
    %v256 = vmul.f32 %v239, %v245
    %v257 = vmul.f32 %v240, %v245
    %v258 = vmul.f32 %v241, %v245
    %v259 = vadd.f32 %v186, %v246
    %v260 = vadd.f32 %v187, %v247
    %v261 = vadd.f32 %v188, %v248
    %v262 = vadd.f32 %v189, %v249
    %v263 = vadd.f32 %v190, %v250
    %v264 = vadd.f32 %v191, %v251
    %v265 = vadd.f32 %v192, %v252
    %v266 = vadd.f32 %v193, %v253
    %v267 = vadd.f32 %v194, %v254
    %v268 = vadd.f32 %v195, %v255
    %v269 = vadd.f32 %v196, %v256
    %v270 = vadd.f32 %v197, %v257
    %v271 = vadd.f32 %v198, %v258
    %v272 = vlaneseq
    %v273 = vshrl.u32 %v272, 7
    %v274 = vsub.s32 3, %v273
    %v275 = vrot.slane %v46, %v274
    %vm276 = vcmp.eq.s32.totalorder %v53, %v275
    %vm277 = vcmp.eq.s32.totalorder %v54, %v275
    %vm278 = vcmp.eq.s32.totalorder %v55, %v275
    %vm279 = vcmp.eq.s32.totalorder %v56, %v275
    %vm280 = vcmp.eq.s32.totalorder %v57, %v275
    %vm281 = vcmp.eq.s32.totalorder %v58, %v275
    %vm282 = vcmp.eq.s32.totalorder %v59, %v275
    %vm283 = vcmp.eq.s32.totalorder %v60, %v275
    %vm284 = vcmp.eq.s32.totalorder %v61, %v275
    %vm285 = vcmp.eq.s32.totalorder %v62, %v275
    %vm286 = vcmp.eq.s32.totalorder %v63, %v275
    %vm287 = vcmp.eq.s32.totalorder %v64, %v275
    %vm288 = vcmp.eq.s32.totalorder %v65, %v275
    %v289 = vsel %vm276, 1, 0
    %v290 = vsel %vm277, 1, 0
    %v291 = vsel %vm278, 1, 0
    %v292 = vsel %vm279, 1, 0
    %v293 = vsel %vm280, 1, 0
    %v294 = vsel %vm281, 1, 0
    %v295 = vsel %vm282, 1, 0
    %v296 = vsel %vm283, 1, 0
    %v297 = vsel %vm284, 1, 0
    %v298 = vsel %vm285, 1, 0
    %v299 = vsel %vm286, 1, 0
    %v300 = vsel %vm287, 1, 0
    %v301 = vsel %vm288, 1, 0
    %v302 = vcvt.s32.f32 %v289
    %v303 = vcvt.s32.f32 %v290
    %v304 = vcvt.s32.f32 %v291
    %v305 = vcvt.s32.f32 %v292
    %v306 = vcvt.s32.f32 %v293
    %v307 = vcvt.s32.f32 %v294
    %v308 = vcvt.s32.f32 %v295
    %v309 = vcvt.s32.f32 %v296
    %v310 = vcvt.s32.f32 %v297
    %v311 = vcvt.s32.f32 %v298
    %v312 = vcvt.s32.f32 %v299
    %v313 = vcvt.s32.f32 %v300
    %v314 = vcvt.s32.f32 %v301
    %v315 = vlaneseq
    %v316 = vshrl.u32 %v315, 7
    %v317 = vsub.s32 3, %v316
    %v318 = vrot.slane %v48, %v317
    %v319 = vmul.f32 %v302, %v318
    %v320 = vmul.f32 %v303, %v318
    %v321 = vmul.f32 %v304, %v318
    %v322 = vmul.f32 %v305, %v318
    %v323 = vmul.f32 %v306, %v318
    %v324 = vmul.f32 %v307, %v318
    %v325 = vmul.f32 %v308, %v318
    %v326 = vmul.f32 %v309, %v318
    %v327 = vmul.f32 %v310, %v318
    %v328 = vmul.f32 %v311, %v318
    %v329 = vmul.f32 %v312, %v318
    %v330 = vmul.f32 %v313, %v318
    %v331 = vmul.f32 %v314, %v318
    %v332 = vadd.f32 %v259, %v319
    %v333 = vadd.f32 %v260, %v320
    %v334 = vadd.f32 %v261, %v321
    %v335 = vadd.f32 %v262, %v322
    %v336 = vadd.f32 %v263, %v323
    %v337 = vadd.f32 %v264, %v324
    %v338 = vadd.f32 %v265, %v325
    %v339 = vadd.f32 %v266, %v326
    %v340 = vadd.f32 %v267, %v327
    %v341 = vadd.f32 %v268, %v328
    %v342 = vadd.f32 %v269, %v329
    %v343 = vadd.f32 %v270, %v330
    %v344 = vadd.f32 %v271, %v331
    %v345 = vlaneseq
    %v346 = vshrl.u32 %v345, 7
    %v347 = vsub.s32 4, %v346
    %v348 = vrot.slane %v46, %v347
    %vm349 = vcmp.eq.s32.totalorder %v53, %v348
    %vm350 = vcmp.eq.s32.totalorder %v54, %v348
    %vm351 = vcmp.eq.s32.totalorder %v55, %v348
    %vm352 = vcmp.eq.s32.totalorder %v56, %v348
    %vm353 = vcmp.eq.s32.totalorder %v57, %v348
    %vm354 = vcmp.eq.s32.totalorder %v58, %v348
    %vm355 = vcmp.eq.s32.totalorder %v59, %v348
    %vm356 = vcmp.eq.s32.totalorder %v60, %v348
    %vm357 = vcmp.eq.s32.totalorder %v61, %v348
    %vm358 = vcmp.eq.s32.totalorder %v62, %v348
    %vm359 = vcmp.eq.s32.totalorder %v63, %v348
    %vm360 = vcmp.eq.s32.totalorder %v64, %v348
    %vm361 = vcmp.eq.s32.totalorder %v65, %v348
    %v362 = vsel %vm349, 1, 0
    %v363 = vsel %vm350, 1, 0
    %v364 = vsel %vm351, 1, 0
    %v365 = vsel %vm352, 1, 0
    %v366 = vsel %vm353, 1, 0
    %v367 = vsel %vm354, 1, 0
    %v368 = vsel %vm355, 1, 0
    %v369 = vsel %vm356, 1, 0
    %v370 = vsel %vm357, 1, 0
    %v371 = vsel %vm358, 1, 0
    %v372 = vsel %vm359, 1, 0
    %v373 = vsel %vm360, 1, 0
    %v374 = vsel %vm361, 1, 0
    %v375 = vcvt.s32.f32 %v362
    %v376 = vcvt.s32.f32 %v363
    %v377 = vcvt.s32.f32 %v364
    %v378 = vcvt.s32.f32 %v365
    %v379 = vcvt.s32.f32 %v366
    %v380 = vcvt.s32.f32 %v367
    %v381 = vcvt.s32.f32 %v368
    %v382 = vcvt.s32.f32 %v369
    %v383 = vcvt.s32.f32 %v370
    %v384 = vcvt.s32.f32 %v371
    %v385 = vcvt.s32.f32 %v372
    %v386 = vcvt.s32.f32 %v373
    %v387 = vcvt.s32.f32 %v374
    %v388 = vlaneseq
    %v389 = vshrl.u32 %v388, 7
    %v390 = vsub.s32 4, %v389
    %v391 = vrot.slane %v48, %v390
    %v392 = vmul.f32 %v375, %v391
    %v393 = vmul.f32 %v376, %v391
    %v394 = vmul.f32 %v377, %v391
    %v395 = vmul.f32 %v378, %v391
    %v396 = vmul.f32 %v379, %v391
    %v397 = vmul.f32 %v380, %v391
    %v398 = vmul.f32 %v381, %v391
    %v399 = vmul.f32 %v382, %v391
    %v400 = vmul.f32 %v383, %v391
    %v401 = vmul.f32 %v384, %v391
    %v402 = vmul.f32 %v385, %v391
    %v403 = vmul.f32 %v386, %v391
    %v404 = vmul.f32 %v387, %v391
    %v405 = vadd.f32 %v332, %v392
    %v406 = vadd.f32 %v333, %v393
    %v407 = vadd.f32 %v334, %v394
    %v408 = vadd.f32 %v335, %v395
    %v409 = vadd.f32 %v336, %v396
    %v410 = vadd.f32 %v337, %v397
    %v411 = vadd.f32 %v338, %v398
    %v412 = vadd.f32 %v339, %v399
    %v413 = vadd.f32 %v340, %v400
    %v414 = vadd.f32 %v341, %v401
    %v415 = vadd.f32 %v342, %v402
    %v416 = vadd.f32 %v343, %v403
    %v417 = vadd.f32 %v344, %v404
    %v418 = vlaneseq
    %v419 = vshrl.u32 %v418, 7
    %v420 = vsub.s32 5, %v419
    %v421 = vrot.slane %v46, %v420
    %vm422 = vcmp.eq.s32.totalorder %v53, %v421
    %vm423 = vcmp.eq.s32.totalorder %v54, %v421
    %vm424 = vcmp.eq.s32.totalorder %v55, %v421
    %vm425 = vcmp.eq.s32.totalorder %v56, %v421
    %vm426 = vcmp.eq.s32.totalorder %v57, %v421
    %vm427 = vcmp.eq.s32.totalorder %v58, %v421
    %vm428 = vcmp.eq.s32.totalorder %v59, %v421
    %vm429 = vcmp.eq.s32.totalorder %v60, %v421
    %vm430 = vcmp.eq.s32.totalorder %v61, %v421
    %vm431 = vcmp.eq.s32.totalorder %v62, %v421
    %vm432 = vcmp.eq.s32.totalorder %v63, %v421
    %vm433 = vcmp.eq.s32.totalorder %v64, %v421
    %vm434 = vcmp.eq.s32.totalorder %v65, %v421
    %v435 = vsel %vm422, 1, 0
    %v436 = vsel %vm423, 1, 0
    %v437 = vsel %vm424, 1, 0
    %v438 = vsel %vm425, 1, 0
    %v439 = vsel %vm426, 1, 0
    %v440 = vsel %vm427, 1, 0
    %v441 = vsel %vm428, 1, 0
    %v442 = vsel %vm429, 1, 0
    %v443 = vsel %vm430, 1, 0
    %v444 = vsel %vm431, 1, 0
    %v445 = vsel %vm432, 1, 0
    %v446 = vsel %vm433, 1, 0
    %v447 = vsel %vm434, 1, 0
    %v448 = vcvt.s32.f32 %v435
    %v449 = vcvt.s32.f32 %v436
    %v450 = vcvt.s32.f32 %v437
    %v451 = vcvt.s32.f32 %v438
    %v452 = vcvt.s32.f32 %v439
    %v453 = vcvt.s32.f32 %v440
    %v454 = vcvt.s32.f32 %v441
    %v455 = vcvt.s32.f32 %v442
    %v456 = vcvt.s32.f32 %v443
    %v457 = vcvt.s32.f32 %v444
    %v458 = vcvt.s32.f32 %v445
    %v459 = vcvt.s32.f32 %v446
    %v460 = vcvt.s32.f32 %v447
    %v461 = vlaneseq
    %v462 = vshrl.u32 %v461, 7
    %v463 = vsub.s32 5, %v462
    %v464 = vrot.slane %v48, %v463
    %v465 = vmul.f32 %v448, %v464
    %v466 = vmul.f32 %v449, %v464
    %v467 = vmul.f32 %v450, %v464
    %v468 = vmul.f32 %v451, %v464
    %v469 = vmul.f32 %v452, %v464
    %v470 = vmul.f32 %v453, %v464
    %v471 = vmul.f32 %v454, %v464
    %v472 = vmul.f32 %v455, %v464
    %v473 = vmul.f32 %v456, %v464
    %v474 = vmul.f32 %v457, %v464
    %v475 = vmul.f32 %v458, %v464
    %v476 = vmul.f32 %v459, %v464
    %v477 = vmul.f32 %v460, %v464
    %v478 = vadd.f32 %v405, %v465
    %v479 = vadd.f32 %v406, %v466
    %v480 = vadd.f32 %v407, %v467
    %v481 = vadd.f32 %v408, %v468
    %v482 = vadd.f32 %v409, %v469
    %v483 = vadd.f32 %v410, %v470
    %v484 = vadd.f32 %v411, %v471
    %v485 = vadd.f32 %v412, %v472
    %v486 = vadd.f32 %v413, %v473
    %v487 = vadd.f32 %v414, %v474
    %v488 = vadd.f32 %v415, %v475
    %v489 = vadd.f32 %v416, %v476
    %v490 = vadd.f32 %v417, %v477
    %v491 = vlaneseq
    %v492 = vshrl.u32 %v491, 7
    %v493 = vsub.s32 6, %v492
    %v494 = vrot.slane %v46, %v493
    %vm495 = vcmp.eq.s32.totalorder %v53, %v494
    %vm496 = vcmp.eq.s32.totalorder %v54, %v494
    %vm497 = vcmp.eq.s32.totalorder %v55, %v494
    %vm498 = vcmp.eq.s32.totalorder %v56, %v494
    %vm499 = vcmp.eq.s32.totalorder %v57, %v494
    %vm500 = vcmp.eq.s32.totalorder %v58, %v494
    %vm501 = vcmp.eq.s32.totalorder %v59, %v494
    %vm502 = vcmp.eq.s32.totalorder %v60, %v494
    %vm503 = vcmp.eq.s32.totalorder %v61, %v494
    %vm504 = vcmp.eq.s32.totalorder %v62, %v494
    %vm505 = vcmp.eq.s32.totalorder %v63, %v494
    %vm506 = vcmp.eq.s32.totalorder %v64, %v494
    %vm507 = vcmp.eq.s32.totalorder %v65, %v494
    %v508 = vsel %vm495, 1, 0
    %v509 = vsel %vm496, 1, 0
    %v510 = vsel %vm497, 1, 0
    %v511 = vsel %vm498, 1, 0
    %v512 = vsel %vm499, 1, 0
    %v513 = vsel %vm500, 1, 0
    %v514 = vsel %vm501, 1, 0
    %v515 = vsel %vm502, 1, 0
    %v516 = vsel %vm503, 1, 0
    %v517 = vsel %vm504, 1, 0
    %v518 = vsel %vm505, 1, 0
    %v519 = vsel %vm506, 1, 0
    %v520 = vsel %vm507, 1, 0
    %v521 = vcvt.s32.f32 %v508
    %v522 = vcvt.s32.f32 %v509
    %v523 = vcvt.s32.f32 %v510
    %v524 = vcvt.s32.f32 %v511
    %v525 = vcvt.s32.f32 %v512
    %v526 = vcvt.s32.f32 %v513
    %v527 = vcvt.s32.f32 %v514
    %v528 = vcvt.s32.f32 %v515
    %v529 = vcvt.s32.f32 %v516
    %v530 = vcvt.s32.f32 %v517
    %v531 = vcvt.s32.f32 %v518
    %v532 = vcvt.s32.f32 %v519
    %v533 = vcvt.s32.f32 %v520
    %v534 = vlaneseq
    %v535 = vshrl.u32 %v534, 7
    %v536 = vsub.s32 6, %v535
    %v537 = vrot.slane %v48, %v536
    %v538 = vmul.f32 %v521, %v537
    %v539 = vmul.f32 %v522, %v537
    %v540 = vmul.f32 %v523, %v537
    %v541 = vmul.f32 %v524, %v537
    %v542 = vmul.f32 %v525, %v537
    %v543 = vmul.f32 %v526, %v537
    %v544 = vmul.f32 %v527, %v537
    %v545 = vmul.f32 %v528, %v537
    %v546 = vmul.f32 %v529, %v537
    %v547 = vmul.f32 %v530, %v537
    %v548 = vmul.f32 %v531, %v537
    %v549 = vmul.f32 %v532, %v537
    %v550 = vmul.f32 %v533, %v537
    %v551 = vadd.f32 %v478, %v538
    %v552 = vadd.f32 %v479, %v539
    %v553 = vadd.f32 %v480, %v540
    %v554 = vadd.f32 %v481, %v541
    %v555 = vadd.f32 %v482, %v542
    %v556 = vadd.f32 %v483, %v543
    %v557 = vadd.f32 %v484, %v544
    %v558 = vadd.f32 %v485, %v545
    %v559 = vadd.f32 %v486, %v546
    %v560 = vadd.f32 %v487, %v547
    %v561 = vadd.f32 %v488, %v548
    %v562 = vadd.f32 %v489, %v549
    %v563 = vadd.f32 %v490, %v550
    %v564 = vlaneseq
    %v565 = vshrl.u32 %v564, 7
    %v566 = vsub.s32 7, %v565
    %v567 = vrot.slane %v46, %v566
    %vm568 = vcmp.eq.s32.totalorder %v53, %v567
    %vm569 = vcmp.eq.s32.totalorder %v54, %v567
    %vm570 = vcmp.eq.s32.totalorder %v55, %v567
    %vm571 = vcmp.eq.s32.totalorder %v56, %v567
    %vm572 = vcmp.eq.s32.totalorder %v57, %v567
    %vm573 = vcmp.eq.s32.totalorder %v58, %v567
    %vm574 = vcmp.eq.s32.totalorder %v59, %v567
    %vm575 = vcmp.eq.s32.totalorder %v60, %v567
    %vm576 = vcmp.eq.s32.totalorder %v61, %v567
    %vm577 = vcmp.eq.s32.totalorder %v62, %v567
    %vm578 = vcmp.eq.s32.totalorder %v63, %v567
    %vm579 = vcmp.eq.s32.totalorder %v64, %v567
    %vm580 = vcmp.eq.s32.totalorder %v65, %v567
    %v581 = vsel %vm568, 1, 0
    %v582 = vsel %vm569, 1, 0
    %v583 = vsel %vm570, 1, 0
    %v584 = vsel %vm571, 1, 0
    %v585 = vsel %vm572, 1, 0
    %v586 = vsel %vm573, 1, 0
    %v587 = vsel %vm574, 1, 0
    %v588 = vsel %vm575, 1, 0
    %v589 = vsel %vm576, 1, 0
    %v590 = vsel %vm577, 1, 0
    %v591 = vsel %vm578, 1, 0
    %v592 = vsel %vm579, 1, 0
    %v593 = vsel %vm580, 1, 0
    %v594 = vcvt.s32.f32 %v581
    %v595 = vcvt.s32.f32 %v582
    %v596 = vcvt.s32.f32 %v583
    %v597 = vcvt.s32.f32 %v584
    %v598 = vcvt.s32.f32 %v585
    %v599 = vcvt.s32.f32 %v586
    %v600 = vcvt.s32.f32 %v587
    %v601 = vcvt.s32.f32 %v588
    %v602 = vcvt.s32.f32 %v589
    %v603 = vcvt.s32.f32 %v590
    %v604 = vcvt.s32.f32 %v591
    %v605 = vcvt.s32.f32 %v592
    %v606 = vcvt.s32.f32 %v593
    %v607 = vlaneseq
    %v608 = vshrl.u32 %v607, 7
    %v609 = vsub.s32 7, %v608
    %v610 = vrot.slane %v48, %v609
    %v611 = vmul.f32 %v594, %v610
    %v612 = vmul.f32 %v595, %v610
    %v613 = vmul.f32 %v596, %v610
    %v614 = vmul.f32 %v597, %v610
    %v615 = vmul.f32 %v598, %v610
    %v616 = vmul.f32 %v599, %v610
    %v617 = vmul.f32 %v600, %v610
    %v618 = vmul.f32 %v601, %v610
    %v619 = vmul.f32 %v602, %v610
    %v620 = vmul.f32 %v603, %v610
    %v621 = vmul.f32 %v604, %v610
    %v622 = vmul.f32 %v605, %v610
    %v623 = vmul.f32 %v606, %v610
    %v624 = vadd.f32 %v551, %v611
    %v625 = vadd.f32 %v552, %v612
    %v626 = vadd.f32 %v553, %v613
    %v627 = vadd.f32 %v554, %v614
    %v628 = vadd.f32 %v555, %v615
    %v629 = vadd.f32 %v556, %v616
    %v630 = vadd.f32 %v557, %v617
    %v631 = vadd.f32 %v558, %v618
    %v632 = vadd.f32 %v559, %v619
    %v633 = vadd.f32 %v560, %v620
    %v634 = vadd.f32 %v561, %v621
    %v635 = vadd.f32 %v562, %v622
    %v636 = vadd.f32 %v563, %v623
    %v637 = vlaneseq
    %v638 = vshrl.u32 %v637, 7
    %v639 = vsub.s32 0, %v638
    %v640 = vrot.slane %v47, %v639
    %vm641 = vcmp.eq.s32.totalorder %v53, %v640
    %vm642 = vcmp.eq.s32.totalorder %v54, %v640
    %vm643 = vcmp.eq.s32.totalorder %v55, %v640
    %vm644 = vcmp.eq.s32.totalorder %v56, %v640
    %vm645 = vcmp.eq.s32.totalorder %v57, %v640
    %vm646 = vcmp.eq.s32.totalorder %v58, %v640
    %vm647 = vcmp.eq.s32.totalorder %v59, %v640
    %vm648 = vcmp.eq.s32.totalorder %v60, %v640
    %vm649 = vcmp.eq.s32.totalorder %v61, %v640
    %vm650 = vcmp.eq.s32.totalorder %v62, %v640
    %vm651 = vcmp.eq.s32.totalorder %v63, %v640
    %vm652 = vcmp.eq.s32.totalorder %v64, %v640
    %vm653 = vcmp.eq.s32.totalorder %v65, %v640
    %v654 = vsel %vm641, 1, 0
    %v655 = vsel %vm642, 1, 0
    %v656 = vsel %vm643, 1, 0
    %v657 = vsel %vm644, 1, 0
    %v658 = vsel %vm645, 1, 0
    %v659 = vsel %vm646, 1, 0
    %v660 = vsel %vm647, 1, 0
    %v661 = vsel %vm648, 1, 0
    %v662 = vsel %vm649, 1, 0
    %v663 = vsel %vm650, 1, 0
    %v664 = vsel %vm651, 1, 0
    %v665 = vsel %vm652, 1, 0
    %v666 = vsel %vm653, 1, 0
    %v667 = vcvt.s32.f32 %v654
    %v668 = vcvt.s32.f32 %v655
    %v669 = vcvt.s32.f32 %v656
    %v670 = vcvt.s32.f32 %v657
    %v671 = vcvt.s32.f32 %v658
    %v672 = vcvt.s32.f32 %v659
    %v673 = vcvt.s32.f32 %v660
    %v674 = vcvt.s32.f32 %v661
    %v675 = vcvt.s32.f32 %v662
    %v676 = vcvt.s32.f32 %v663
    %v677 = vcvt.s32.f32 %v664
    %v678 = vcvt.s32.f32 %v665
    %v679 = vcvt.s32.f32 %v666
    %v680 = vlaneseq
    %v681 = vshrl.u32 %v680, 7
    %v682 = vsub.s32 0, %v681
    %v683 = vrot.slane %v49, %v682
    %v684 = vmul.f32 %v667, %v683
    %v685 = vmul.f32 %v668, %v683
    %v686 = vmul.f32 %v669, %v683
    %v687 = vmul.f32 %v670, %v683
    %v688 = vmul.f32 %v671, %v683
    %v689 = vmul.f32 %v672, %v683
    %v690 = vmul.f32 %v673, %v683
    %v691 = vmul.f32 %v674, %v683
    %v692 = vmul.f32 %v675, %v683
    %v693 = vmul.f32 %v676, %v683
    %v694 = vmul.f32 %v677, %v683
    %v695 = vmul.f32 %v678, %v683
    %v696 = vmul.f32 %v679, %v683
    %v697 = vadd.f32 %v624, %v684
    %v698 = vadd.f32 %v625, %v685
    %v699 = vadd.f32 %v626, %v686
    %v700 = vadd.f32 %v627, %v687
    %v701 = vadd.f32 %v628, %v688
    %v702 = vadd.f32 %v629, %v689
    %v703 = vadd.f32 %v630, %v690
    %v704 = vadd.f32 %v631, %v691
    %v705 = vadd.f32 %v632, %v692
    %v706 = vadd.f32 %v633, %v693
    %v707 = vadd.f32 %v634, %v694
    %v708 = vadd.f32 %v635, %v695
    %v709 = vadd.f32 %v636, %v696
    %v710 = vlaneseq
    %v711 = vshrl.u32 %v710, 7
    %v712 = vsub.s32 1, %v711
    %v713 = vrot.slane %v47, %v712
    %vm714 = vcmp.eq.s32.totalorder %v53, %v713
    %vm715 = vcmp.eq.s32.totalorder %v54, %v713
    %vm716 = vcmp.eq.s32.totalorder %v55, %v713
    %vm717 = vcmp.eq.s32.totalorder %v56, %v713
    %vm718 = vcmp.eq.s32.totalorder %v57, %v713
    %vm719 = vcmp.eq.s32.totalorder %v58, %v713
    %vm720 = vcmp.eq.s32.totalorder %v59, %v713
    %vm721 = vcmp.eq.s32.totalorder %v60, %v713
    %vm722 = vcmp.eq.s32.totalorder %v61, %v713
    %vm723 = vcmp.eq.s32.totalorder %v62, %v713
    %vm724 = vcmp.eq.s32.totalorder %v63, %v713
    %vm725 = vcmp.eq.s32.totalorder %v64, %v713
    %vm726 = vcmp.eq.s32.totalorder %v65, %v713
    %v727 = vsel %vm714, 1, 0
    %v728 = vsel %vm715, 1, 0
    %v729 = vsel %vm716, 1, 0
    %v730 = vsel %vm717, 1, 0
    %v731 = vsel %vm718, 1, 0
    %v732 = vsel %vm719, 1, 0
    %v733 = vsel %vm720, 1, 0
    %v734 = vsel %vm721, 1, 0
    %v735 = vsel %vm722, 1, 0
    %v736 = vsel %vm723, 1, 0
    %v737 = vsel %vm724, 1, 0
    %v738 = vsel %vm725, 1, 0
    %v739 = vsel %vm726, 1, 0
    %v740 = vcvt.s32.f32 %v727
    %v741 = vcvt.s32.f32 %v728
    %v742 = vcvt.s32.f32 %v729
    %v743 = vcvt.s32.f32 %v730
    %v744 = vcvt.s32.f32 %v731
    %v745 = vcvt.s32.f32 %v732
    %v746 = vcvt.s32.f32 %v733
    %v747 = vcvt.s32.f32 %v734
    %v748 = vcvt.s32.f32 %v735
    %v749 = vcvt.s32.f32 %v736
    %v750 = vcvt.s32.f32 %v737
    %v751 = vcvt.s32.f32 %v738
    %v752 = vcvt.s32.f32 %v739
    %v753 = vlaneseq
    %v754 = vshrl.u32 %v753, 7
    %v755 = vsub.s32 1, %v754
    %v756 = vrot.slane %v49, %v755
    %v757 = vmul.f32 %v740, %v756
    %v758 = vmul.f32 %v741, %v756
    %v759 = vmul.f32 %v742, %v756
    %v760 = vmul.f32 %v743, %v756
    %v761 = vmul.f32 %v744, %v756
    %v762 = vmul.f32 %v745, %v756
    %v763 = vmul.f32 %v746, %v756
    %v764 = vmul.f32 %v747, %v756
    %v765 = vmul.f32 %v748, %v756
    %v766 = vmul.f32 %v749, %v756
    %v767 = vmul.f32 %v750, %v756
    %v768 = vmul.f32 %v751, %v756
    %v769 = vmul.f32 %v752, %v756
    %v770 = vadd.f32 %v697, %v757
    %v771 = vadd.f32 %v698, %v758
    %v772 = vadd.f32 %v699, %v759
    %v773 = vadd.f32 %v700, %v760
    %v774 = vadd.f32 %v701, %v761
    %v775 = vadd.f32 %v702, %v762
    %v776 = vadd.f32 %v703, %v763
    %v777 = vadd.f32 %v704, %v764
    %v778 = vadd.f32 %v705, %v765
    %v779 = vadd.f32 %v706, %v766
    %v780 = vadd.f32 %v707, %v767
    %v781 = vadd.f32 %v708, %v768
    %v782 = vadd.f32 %v709, %v769
    %v783 = vld [vmem:[%s3] sm:$0xff]
    %v784 = vld [vmem:[%s3 + $0x8] sm:$0xff]
    %vm785 = vcmask 818176
    %v787 = vsel %vm785, %v783, 0
    %v790 = vsel %vm785, %v784, 0
    %vm792 = vcmask 1043456
    %v794 = vsel %vm792, %v782, 0
    %796 = vmatprep.subr.mxu0 0.0
    %797 = vmatpush1.msra.mxu0 0.0
    %798 = vmatprep.subr.mxu0 0.0
    %799 = vmatpush1.msra.mxu0 0.0
    %800 = vmatprep.subr.mxu0 0.0
    %801 = vmatpush1.msra.mxu0 0.0
    %802 = vmatprep.subr.mxu0 0.0
    %803 = vmatpush1.msra.mxu0 %v794
    %804 = vmatprep.subr.mxu0 0.0
    %805 = vmatpush1.msra.mxu0 %v781
    %806 = vmatprep.subr.mxu0 0.0
    %807 = vmatpush1.msra.mxu0 %v780
    %808 = vmatprep.subr.mxu0 0.0
    %809 = vmatpush1.msra.mxu0 %v779
    %810 = vmatprep.subr.mxu0 0.0
    %811 = vmatpush1.msra.mxu0 %v778
    %812 = vmatprep.subr.mxu0 0.0
    %813 = vmatpush1.msra.mxu0 %v777
    %814 = vmatprep.subr.mxu0 0.0
    %815 = vmatpush1.msra.mxu0 %v776
    %816 = vmatprep.subr.mxu0 0.0
    %817 = vmatpush1.msra.mxu0 %v775
    %818 = vmatprep.subr.mxu0 0.0
    %819 = vmatpush1.msra.mxu0 %v774
    %820 = vmatprep.subr.mxu0 0.0
    %821 = vmatpush1.msra.mxu0 %v773
    %822 = vmatprep.subr.mxu0 0.0
    %823 = vmatpush1.msra.mxu0 %v772
    %824 = vmatprep.subr.mxu0 0.0
    %825 = vmatpush1.msra.mxu0 %v771
    %826 = vmatprep.subr.mxu0 0.0
    %827 = vmatpush1.msra.mxu0 %v770
    %828 = vmatprep.subr.mxu0 0.0
    %829 = vmatpush2.msra.mxu0 0.0
    %830 = vmatprep.subr.mxu0 0.0
    %831 = vmatpush2.msra.mxu0 0.0
    %832 = vmatprep.subr.mxu0 0.0
    %833 = vmatpush2.msra.mxu0 0.0
    %834 = vmatprep.subr.mxu0 0.0
    %835 = vmatpush2.msra.mxu0 0.0
    %836 = vmatprep.subr.mxu0 0.0
    %837 = vmatpush2.msra.mxu0 0.0
    %838 = vmatprep.subr.mxu0 0.0
    %839 = vmatpush2.msra.mxu0 0.0
    %840 = vmatprep.subr.mxu0 0.0
    %841 = vmatpush2.msra.mxu0 0.0
    %842 = vmatprep.subr.mxu0 0.0
    %843 = vmatpush2.msra.mxu0 0.0
    %844 = vmatprep.subr.mxu0 0.0
    %845 = vmatpush2.msra.mxu0 0.0
    %846 = vmatprep.subr.mxu0 0.0
    %847 = vmatpush2.msra.mxu0 0.0
    %848 = vmatprep.subr.mxu0 0.0
    %849 = vmatpush2.msra.mxu0 0.0
    %850 = vmatprep.subr.mxu0 0.0
    %851 = vmatpush2.msra.mxu0 0.0
    %852 = vmatprep.subr.mxu0 0.0
    %853 = vmatpush2.msra.mxu0 0.0
    %854 = vmatprep.subr.mxu0 0.0
    %855 = vmatpush2.msra.mxu0 0.0
    %856 = vmatprep.subr.mxu0 0.0
    %857 = vmatpush2.msra.mxu0 0.0
    %858 = vmatprep.subr.mxu0 0.0
    %859 = vmatpush2.msra.mxu0 0.0
    %860 = vmatprep.mubr.f32.mxu0 0.0
    %861 = vmatmul.mubr.f32.gmra.mxu0 %v787
    %v862 = vpop.f32.mrf.mxu0
    %v863 = vadd.f32 0.0, %v862
    %v864 = vpop.f32.mrf.mxu0
    %865 = vmatprep.mubr.f32.mxu0 0.0
    %866 = vmatmul.mubr.f32.gmra.mxu0 %v790
    %v867 = vpop.f32.mrf.mxu0
    %v868 = vadd.f32 0.0, %v867
    %v869 = vpop.f32.mrf.mxu0
    %870 = vdwg.mxu0
    %v871 = vld [vmem:[%s4] sm:$0xff]
    %v872 = vld [vmem:[%s4 + $0x8] sm:$0xff]
    %v874 = vsel %vm785, %v871, 0
    %v877 = vsel %vm785, %v872, 0
    %879 = vmatprep.subr.mxu0 0.0
    %880 = vmatpush1.msra.mxu0 0.0
    %881 = vmatprep.subr.mxu0 0.0
    %882 = vmatpush1.msra.mxu0 0.0
    %883 = vmatprep.subr.mxu0 0.0
    %884 = vmatpush1.msra.mxu0 0.0
    %885 = vmatprep.subr.mxu0 0.0
    %886 = vmatpush1.msra.mxu0 %v794
    %887 = vmatprep.subr.mxu0 0.0
    %888 = vmatpush1.msra.mxu0 %v781
    %889 = vmatprep.subr.mxu0 0.0
    %890 = vmatpush1.msra.mxu0 %v780
    %891 = vmatprep.subr.mxu0 0.0
    %892 = vmatpush1.msra.mxu0 %v779
    %893 = vmatprep.subr.mxu0 0.0
    %894 = vmatpush1.msra.mxu0 %v778
    %895 = vmatprep.subr.mxu0 0.0
    %896 = vmatpush1.msra.mxu0 %v777
    %897 = vmatprep.subr.mxu0 0.0
    %898 = vmatpush1.msra.mxu0 %v776
    %899 = vmatprep.subr.mxu0 0.0
    %900 = vmatpush1.msra.mxu0 %v775
    %901 = vmatprep.subr.mxu0 0.0
    %902 = vmatpush1.msra.mxu0 %v774
    %903 = vmatprep.subr.mxu0 0.0
    %904 = vmatpush1.msra.mxu0 %v773
    %905 = vmatprep.subr.mxu0 0.0
    %906 = vmatpush1.msra.mxu0 %v772
    %907 = vmatprep.subr.mxu0 0.0
    %908 = vmatpush1.msra.mxu0 %v771
    %909 = vmatprep.subr.mxu0 0.0
    %910 = vmatpush1.msra.mxu0 %v770
    %911 = vmatprep.subr.mxu0 0.0
    %912 = vmatpush2.msra.mxu0 0.0
    %913 = vmatprep.subr.mxu0 0.0
    %914 = vmatpush2.msra.mxu0 0.0
    %915 = vmatprep.subr.mxu0 0.0
    %916 = vmatpush2.msra.mxu0 0.0
    %917 = vmatprep.subr.mxu0 0.0
    %918 = vmatpush2.msra.mxu0 0.0
    %919 = vmatprep.subr.mxu0 0.0
    %920 = vmatpush2.msra.mxu0 0.0
    %921 = vmatprep.subr.mxu0 0.0
    %922 = vmatpush2.msra.mxu0 0.0
    %923 = vmatprep.subr.mxu0 0.0
    %924 = vmatpush2.msra.mxu0 0.0
    %925 = vmatprep.subr.mxu0 0.0
    %926 = vmatpush2.msra.mxu0 0.0
    %927 = vmatprep.subr.mxu0 0.0
    %928 = vmatpush2.msra.mxu0 0.0
    %929 = vmatprep.subr.mxu0 0.0
    %930 = vmatpush2.msra.mxu0 0.0
    %931 = vmatprep.subr.mxu0 0.0
    %932 = vmatpush2.msra.mxu0 0.0
    %933 = vmatprep.subr.mxu0 0.0
    %934 = vmatpush2.msra.mxu0 0.0
    %935 = vmatprep.subr.mxu0 0.0
    %936 = vmatpush2.msra.mxu0 0.0
    %937 = vmatprep.subr.mxu0 0.0
    %938 = vmatpush2.msra.mxu0 0.0
    %939 = vmatprep.subr.mxu0 0.0
    %940 = vmatpush2.msra.mxu0 0.0
    %941 = vmatprep.subr.mxu0 0.0
    %942 = vmatpush2.msra.mxu0 0.0
    %943 = vmatprep.mubr.f32.mxu0 0.0
    %944 = vmatmul.mubr.f32.gmra.mxu0 %v874
    %v945 = vpop.f32.mrf.mxu0
    %v946 = vadd.f32 0.0, %v945
    %v947 = vpop.f32.mrf.mxu0
    %948 = vmatprep.mubr.f32.mxu0 0.0
    %949 = vmatmul.mubr.f32.gmra.mxu0 %v877
    %v950 = vpop.f32.mrf.mxu0
    %v951 = vadd.f32 0.0, %v950
    %v952 = vpop.f32.mrf.mxu0
    %953 = vdwg.mxu0
    %s954 = sld [smem:[#allocation2]]
    %v955 = vstv %s954
    %vm956 = vcmask 130048
    %v958 = vsel %vm956, %v51, 0
    %960 = vmatprep.subr.mxu0 0.0
    %961 = vmatpush1.msra.mxu0 0.0
    %962 = vmatprep.subr.mxu0 0.0
    %963 = vmatpush1.msra.mxu0 0.0
    %964 = vmatprep.subr.mxu0 0.0
    %965 = vmatpush1.msra.mxu0 0.0
    %966 = vmatprep.subr.mxu0 0.0
    %967 = vmatpush1.msra.mxu0 0.0
    %968 = vmatprep.subr.mxu0 0.0
    %969 = vmatpush1.msra.mxu0 0.0
    %970 = vmatprep.subr.mxu0 0.0
    %971 = vmatpush1.msra.mxu0 0.0
    %972 = vmatprep.subr.mxu0 0.0
    %973 = vmatpush1.msra.mxu0 0.0
    %974 = vmatprep.subr.mxu0 0.0
    %975 = vmatpush1.msra.mxu0 0.0
    %976 = vmatprep.subr.mxu0 0.0
    %977 = vmatpush1.msra.mxu0 0.0
    %978 = vmatprep.subr.mxu0 0.0
    %979 = vmatpush1.msra.mxu0 0.0
    %980 = vmatprep.subr.mxu0 0.0
    %981 = vmatpush1.msra.mxu0 0.0
    %982 = vmatprep.subr.mxu0 0.0
    %983 = vmatpush1.msra.mxu0 0.0
    %984 = vmatprep.subr.mxu0 0.0
    %985 = vmatpush1.msra.mxu0 0.0
    %986 = vmatprep.subr.mxu0 0.0
    %987 = vmatpush1.msra.mxu0 0.0
    %988 = vmatprep.subr.mxu0 0.0
    %989 = vmatpush1.msra.mxu0 %v951
    %990 = vmatprep.subr.mxu0 0.0
    %991 = vmatpush1.msra.mxu0 %v946
    %992 = vmatprep.subr.mxu0 0.0
    %993 = vmatpush2.msra.mxu0 0.0
    %994 = vmatprep.subr.mxu0 0.0
    %995 = vmatpush2.msra.mxu0 0.0
    %996 = vmatprep.subr.mxu0 0.0
    %997 = vmatpush2.msra.mxu0 0.0
    %998 = vmatprep.subr.mxu0 0.0
    %999 = vmatpush2.msra.mxu0 0.0
    %1000 = vmatprep.subr.mxu0 0.0
    %1001 = vmatpush2.msra.mxu0 0.0
    %1002 = vmatprep.subr.mxu0 0.0
    %1003 = vmatpush2.msra.mxu0 0.0
    %1004 = vmatprep.subr.mxu0 0.0
    %1005 = vmatpush2.msra.mxu0 0.0
    %1006 = vmatprep.subr.mxu0 0.0
    %1007 = vmatpush2.msra.mxu0 0.0
    %1008 = vmatprep.subr.mxu0 0.0
    %1009 = vmatpush2.msra.mxu0 0.0
    %1010 = vmatprep.subr.mxu0 0.0
    %1011 = vmatpush2.msra.mxu0 0.0
    %1012 = vmatprep.subr.mxu0 0.0
    %1013 = vmatpush2.msra.mxu0 0.0
    %1014 = vmatprep.subr.mxu0 0.0
    %1015 = vmatpush2.msra.mxu0 0.0
    %1016 = vmatprep.subr.mxu0 0.0
    %1017 = vmatpush2.msra.mxu0 0.0
    %1018 = vmatprep.subr.mxu0 0.0
    %1019 = vmatpush2.msra.mxu0 0.0
    %1020 = vmatprep.subr.mxu0 0.0
    %1021 = vmatpush2.msra.mxu0 0.0
    %1022 = vmatprep.subr.mxu0 0.0
    %1023 = vmatpush2.msra.mxu0 0.0
    %1024 = vmatprep.mubr.f32.mxu0 0.0
    %1025 = vmatmul.mubr.f32.gmra.mxu0 %v958
    %v1026 = vpop.f32.mrf.mxu0
    %v1027 = vadd.f32 %v955, %v1026
    %v1028 = vpop.f32.mrf.mxu0
    %1029 = vdwg.mxu0
    %v1030 = vld [vmem:[%s5] sm:$0xff]
    %v1031 = vld [vmem:[%s5 + $0x8] sm:$0xff]
    %v1032 = vld [vmem:[%s5 + $0x10] sm:$0xff]
    %v1033 = vld [vmem:[%s5 + $0x18] sm:$0xff]
    %v1034 = vld [vmem:[%s6] sm:$0xff]
    %v1035 = vld [vmem:[%s6 + $0x8] sm:$0xff]
    %v1036 = vld [vmem:[%s6 + $0x10] sm:$0xff]
    %v1037 = vld [vmem:[%s6 + $0x18] sm:$0xff]
    %1039 = vset.pattern.permute.xlu0 0
    %1040 = vperm.xlu0 %1039, %v1034
    %v1041 = vpop.permute.xlu0 %1040
    %1044 = vset.pattern.permute.xlu0 0
    %1045 = vperm.xlu0 %1044, %v1035
    %v1046 = vpop.permute.xlu0 %1045
    %1049 = vset.pattern.permute.xlu0 0
    %1050 = vperm.xlu0 %1049, %v1036
    %v1051 = vpop.permute.xlu0 %1050
    %1054 = vset.pattern.permute.xlu0 0
    %1055 = vperm.xlu0 %1054, %v1037
    %v1056 = vpop.permute.xlu0 %1055
    %v1059 = vsel %vm956, %v1030, 0
    %v1062 = vsel %vm956, %v1031, 0
    %v1065 = vsel %vm956, %v1032, 0
    %v1068 = vsel %vm956, %v1033, 0
    %1070 = vmatprep.subr.mxu0 0.0
    %1071 = vmatpush1.msra.mxu0 0.0
    %1072 = vmatprep.subr.mxu0 0.0
    %1073 = vmatpush1.msra.mxu0 0.0
    %1074 = vmatprep.subr.mxu0 0.0
    %1075 = vmatpush1.msra.mxu0 0.0
    %1076 = vmatprep.subr.mxu0 0.0
    %1077 = vmatpush1.msra.mxu0 0.0
    %1078 = vmatprep.subr.mxu0 0.0
    %1079 = vmatpush1.msra.mxu0 0.0
    %1080 = vmatprep.subr.mxu0 0.0
    %1081 = vmatpush1.msra.mxu0 0.0
    %1082 = vmatprep.subr.mxu0 0.0
    %1083 = vmatpush1.msra.mxu0 0.0
    %1084 = vmatprep.subr.mxu0 0.0
    %1085 = vmatpush1.msra.mxu0 0.0
    %1086 = vmatprep.subr.mxu0 0.0
    %1087 = vmatpush1.msra.mxu0 0.0
    %1088 = vmatprep.subr.mxu0 0.0
    %1089 = vmatpush1.msra.mxu0 0.0
    %1090 = vmatprep.subr.mxu0 0.0
    %1091 = vmatpush1.msra.mxu0 0.0
    %1092 = vmatprep.subr.mxu0 0.0
    %1093 = vmatpush1.msra.mxu0 0.0
    %1094 = vmatprep.subr.mxu0 0.0
    %1095 = vmatpush1.msra.mxu0 0.0
    %1096 = vmatprep.subr.mxu0 0.0
    %1097 = vmatpush1.msra.mxu0 0.0
    %1098 = vmatprep.subr.mxu0 0.0
    %1099 = vmatpush1.msra.mxu0 %v868
    %1100 = vmatprep.subr.mxu0 0.0
    %1101 = vmatpush1.msra.mxu0 %v863
    %1102 = vmatprep.subr.mxu0 0.0
    %1103 = vmatpush2.msra.mxu0 0.0
    %1104 = vmatprep.subr.mxu0 0.0
    %1105 = vmatpush2.msra.mxu0 0.0
    %1106 = vmatprep.subr.mxu0 0.0
    %1107 = vmatpush2.msra.mxu0 0.0
    %1108 = vmatprep.subr.mxu0 0.0
    %1109 = vmatpush2.msra.mxu0 0.0
    %1110 = vmatprep.subr.mxu0 0.0
    %1111 = vmatpush2.msra.mxu0 0.0
    %1112 = vmatprep.subr.mxu0 0.0
    %1113 = vmatpush2.msra.mxu0 0.0
    %1114 = vmatprep.subr.mxu0 0.0
    %1115 = vmatpush2.msra.mxu0 0.0
    %1116 = vmatprep.subr.mxu0 0.0
    %1117 = vmatpush2.msra.mxu0 0.0
    %1118 = vmatprep.subr.mxu0 0.0
    %1119 = vmatpush2.msra.mxu0 0.0
    %1120 = vmatprep.subr.mxu0 0.0
    %1121 = vmatpush2.msra.mxu0 0.0
    %1122 = vmatprep.subr.mxu0 0.0
    %1123 = vmatpush2.msra.mxu0 0.0
    %1124 = vmatprep.subr.mxu0 0.0
    %1125 = vmatpush2.msra.mxu0 0.0
    %1126 = vmatprep.subr.mxu0 0.0
    %1127 = vmatpush2.msra.mxu0 0.0
    %1128 = vmatprep.subr.mxu0 0.0
    %1129 = vmatpush2.msra.mxu0 0.0
    %1130 = vmatprep.subr.mxu0 0.0
    %1131 = vmatpush2.msra.mxu0 0.0
    %1132 = vmatprep.subr.mxu0 0.0
    %1133 = vmatpush2.msra.mxu0 0.0
    %1134 = vmatprep.mubr.f32.mxu0 0.0
    %1135 = vmatmul.mubr.f32.gmra.mxu0 %v1059
    %v1136 = vpop.f32.mrf.mxu0
    %v1137 = vadd.f32 %v1041, %v1136
    %v1138 = vpop.f32.mrf.mxu0
    %1139 = vmatprep.mubr.f32.mxu0 0.0
    %1140 = vmatmul.mubr.f32.gmra.mxu0 %v1062
    %v1141 = vpop.f32.mrf.mxu0
    %v1142 = vadd.f32 %v1046, %v1141
    %v1143 = vpop.f32.mrf.mxu0
    %1144 = vmatprep.mubr.f32.mxu0 0.0
    %1145 = vmatmul.mubr.f32.gmra.mxu0 %v1065
    %v1146 = vpop.f32.mrf.mxu0
    %v1147 = vadd.f32 %v1051, %v1146
    %v1148 = vpop.f32.mrf.mxu0
    %1149 = vmatprep.mubr.f32.mxu0 0.0
    %1150 = vmatmul.mubr.f32.gmra.mxu0 %v1068
    %v1151 = vpop.f32.mrf.mxu0
    %v1152 = vadd.f32 %v1056, %v1151
    %v1153 = vpop.f32.mrf.mxu0
    %1154 = vdwg.mxu0
    %v1155 = vmax.f32 %v1137, 0.0
    %v1156 = vmax.f32 %v1142, 0.0
    %v1157 = vmax.f32 %v1147, 0.0
    %v1158 = vmax.f32 %v1152, 0.0
    %1165 = vrot.lane.b32.xlu0 %v1155, 112
    %v1166 = vpop.permute.xlu0 %1165
    %1167 = vrot.lane.b32.xlu0 %v1156, 112
    %v1168 = vpop.permute.xlu0 %1167
    %1169 = vrot.lane.b32.xlu0 %v1157, 112
    %v1170 = vpop.permute.xlu0 %1169
    %1171 = vrot.lane.b32.xlu0 %v1158, 112
    %v1172 = vpop.permute.xlu0 %1171
    %1173 = vrot.lane.b32.xlu0 %v863, 112
    %v1174 = vpop.permute.xlu0 %1173
    %1175 = vrot.lane.b32.xlu0 %v868, 112
    %v1176 = vpop.permute.xlu0 %1175
    %v1183 = vsub.f32 %v1155, %v1166
    %v1184 = vsub.f32 %v1156, %v1168
    %v1185 = vsub.f32 %v1157, %v1170
    %v1186 = vsub.f32 %v1158, %v1172
    %v1187 = vsub.f32 %v863, %v1174
    %v1188 = vsub.f32 %v868, %v1176
    %v1189 = vand.u32 2147483647, %v1183
    %v1190 = vand.u32 2147483647, %v1184
    %v1191 = vand.u32 2147483647, %v1185
    %v1192 = vand.u32 2147483647, %v1186
    %v1193 = vand.u32 2147483647, %v1187
    %v1194 = vand.u32 2147483647, %v1188
    %s1195 = sld [smem:[#allocation2 + $0x1]]
    %v1196 = vstv %s1195
    %v1197 = vlaneseq
    %v1198 = vshrl.u32 %v1197, 7
    %v1199 = vsub.s32 0, %v1198
    %v1200 = vrot.slane %v51, %v1199
    %1201 = vrot.lane.b32.xlu0 %v1200, 112
    %v1202 = vpop.permute.xlu0 %1201
    %vm1203 = vcmask 392192
    %v1204 = vsel %vm1203, %v1202, 0
    %1206 = vmatprep.subr.mxu0 0.0
    %1207 = vmatpush1.msra.mxu0 0.0
    %1208 = vmatprep.subr.mxu0 0.0
    %1209 = vmatpush1.msra.mxu0 0.0
    %1210 = vmatprep.subr.mxu0 0.0
    %1211 = vmatpush1.msra.mxu0 0.0
    %1212 = vmatprep.subr.mxu0 0.0
    %1213 = vmatpush1.msra.mxu0 0.0
    %1214 = vmatprep.subr.mxu0 0.0
    %1215 = vmatpush1.msra.mxu0 0.0
    %1216 = vmatprep.subr.mxu0 0.0
    %1217 = vmatpush1.msra.mxu0 0.0
    %1218 = vmatprep.subr.mxu0 0.0
    %1219 = vmatpush1.msra.mxu0 0.0
    %1220 = vmatprep.subr.mxu0 0.0
    %1221 = vmatpush1.msra.mxu0 0.0
    %1222 = vmatprep.subr.mxu0 0.0
    %1223 = vmatpush1.msra.mxu0 0.0
    %1224 = vmatprep.subr.mxu0 0.0
    %1225 = vmatpush1.msra.mxu0 0.0
    %1226 = vmatprep.subr.mxu0 0.0
    %1227 = vmatpush1.msra.mxu0 %v1194
    %1228 = vmatprep.subr.mxu0 0.0
    %1229 = vmatpush1.msra.mxu0 %v1193
    %1230 = vmatprep.subr.mxu0 0.0
    %1231 = vmatpush1.msra.mxu0 %v1192
    %1232 = vmatprep.subr.mxu0 0.0
    %1233 = vmatpush1.msra.mxu0 %v1191
    %1234 = vmatprep.subr.mxu0 0.0
    %1235 = vmatpush1.msra.mxu0 %v1190
    %1236 = vmatprep.subr.mxu0 0.0
    %1237 = vmatpush1.msra.mxu0 %v1189
    %1238 = vmatprep.subr.mxu0 0.0
    %1239 = vmatpush2.msra.mxu0 0.0
    %1240 = vmatprep.subr.mxu0 0.0
    %1241 = vmatpush2.msra.mxu0 0.0
    %1242 = vmatprep.subr.mxu0 0.0
    %1243 = vmatpush2.msra.mxu0 0.0
    %1244 = vmatprep.subr.mxu0 0.0
    %1245 = vmatpush2.msra.mxu0 0.0
    %1246 = vmatprep.subr.mxu0 0.0
    %1247 = vmatpush2.msra.mxu0 0.0
    %1248 = vmatprep.subr.mxu0 0.0
    %1249 = vmatpush2.msra.mxu0 0.0
    %1250 = vmatprep.subr.mxu0 0.0
    %1251 = vmatpush2.msra.mxu0 0.0
    %1252 = vmatprep.subr.mxu0 0.0
    %1253 = vmatpush2.msra.mxu0 0.0
    %1254 = vmatprep.subr.mxu0 0.0
    %1255 = vmatpush2.msra.mxu0 0.0
    %1256 = vmatprep.subr.mxu0 0.0
    %1257 = vmatpush2.msra.mxu0 0.0
    %1258 = vmatprep.subr.mxu0 0.0
    %1259 = vmatpush2.msra.mxu0 0.0
    %1260 = vmatprep.subr.mxu0 0.0
    %1261 = vmatpush2.msra.mxu0 0.0
    %1262 = vmatprep.subr.mxu0 0.0
    %1263 = vmatpush2.msra.mxu0 0.0
    %1264 = vmatprep.subr.mxu0 0.0
    %1265 = vmatpush2.msra.mxu0 0.0
    %1266 = vmatprep.subr.mxu0 0.0
    %1267 = vmatpush2.msra.mxu0 0.0
    %1268 = vmatprep.subr.mxu0 0.0
    %1269 = vmatpush2.msra.mxu0 0.0
    %1270 = vmatprep.mubr.f32.mxu0 0.0
    %1271 = vmatmul.mubr.f32.gmra.mxu0 %v1204
    %v1272 = vpop.f32.mrf.mxu0
    %v1273 = vadd.f32 %v1196, %v1272
    %v1274 = vpop.f32.mrf.mxu0
    %1275 = vdwg.mxu0
    %vm1276 = vcmp.eq.f32.partialorder %v50, -1.0
    %v1277 = vsel %vm1276, -inf, %v1273
    %v1278 = vxor.u32 %v1027, 2147483648
    %v1279 = vmul.f32 %v1278, 1.442695
    %v1280 = vpow.pop %v1279
    %v1281 = vadd.f32 %v1280, 1.0
    %v1282 = vrcp.pop %v1281
    %v1283 = vmul.f32 1.0, %v1282
    %1285 = vrot.lane.b32.xlu0 %v1283, 112
    %v1286 = vpop.permute.xlu0 %1285
    %v1288 = vsub.f32 %v50, %v1286
    %vm1289 = vcmp.ne.f32.partialorder %v50, -1.0
    %v1290 = vsel %vm1289, 1, 0
    %1291 = vrot.lane.b32.xlu0 %v1155, 96
    %v1292 = vpop.permute.xlu0 %1291
    %1293 = vrot.lane.b32.xlu0 %v1156, 96
    %v1294 = vpop.permute.xlu0 %1293
    %1295 = vrot.lane.b32.xlu0 %v1157, 96
    %v1296 = vpop.permute.xlu0 %1295
    %1297 = vrot.lane.b32.xlu0 %v1158, 96
    %v1298 = vpop.permute.xlu0 %1297
    %1299 = vrot.lane.b32.xlu0 %v863, 96
    %v1300 = vpop.permute.xlu0 %1299
    %1301 = vrot.lane.b32.xlu0 %v868, 96
    %v1302 = vpop.permute.xlu0 %1301
    %v1309 = vsub.f32 %v1155, %v1292
    %v1310 = vsub.f32 %v1156, %v1294
    %v1311 = vsub.f32 %v1157, %v1296
    %v1312 = vsub.f32 %v1158, %v1298
    %v1313 = vsub.f32 %v863, %v1300
    %v1314 = vsub.f32 %v868, %v1302
    %v1315 = vand.u32 2147483647, %v1309
    %v1316 = vand.u32 2147483647, %v1310
    %v1317 = vand.u32 2147483647, %v1311
    %v1318 = vand.u32 2147483647, %v1312
    %v1319 = vand.u32 2147483647, %v1313
    %v1320 = vand.u32 2147483647, %v1314
    %1321 = vmatprep.subr.mxu0 0.0
    %1322 = vmatpush1.msra.mxu0 0.0
    %1323 = vmatprep.subr.mxu0 0.0
    %1324 = vmatpush1.msra.mxu0 0.0
    %1325 = vmatprep.subr.mxu0 0.0
    %1326 = vmatpush1.msra.mxu0 0.0
    %1327 = vmatprep.subr.mxu0 0.0
    %1328 = vmatpush1.msra.mxu0 0.0
    %1329 = vmatprep.subr.mxu0 0.0
    %1330 = vmatpush1.msra.mxu0 0.0
    %1331 = vmatprep.subr.mxu0 0.0
    %1332 = vmatpush1.msra.mxu0 0.0
    %1333 = vmatprep.subr.mxu0 0.0
    %1334 = vmatpush1.msra.mxu0 0.0
    %1335 = vmatprep.subr.mxu0 0.0
    %1336 = vmatpush1.msra.mxu0 0.0
    %1337 = vmatprep.subr.mxu0 0.0
    %1338 = vmatpush1.msra.mxu0 0.0
    %1339 = vmatprep.subr.mxu0 0.0
    %1340 = vmatpush1.msra.mxu0 0.0
    %1341 = vmatprep.subr.mxu0 0.0
    %1342 = vmatpush1.msra.mxu0 %v1320
    %1343 = vmatprep.subr.mxu0 0.0
    %1344 = vmatpush1.msra.mxu0 %v1319
    %1345 = vmatprep.subr.mxu0 0.0
    %1346 = vmatpush1.msra.mxu0 %v1318
    %1347 = vmatprep.subr.mxu0 0.0
    %1348 = vmatpush1.msra.mxu0 %v1317
    %1349 = vmatprep.subr.mxu0 0.0
    %1350 = vmatpush1.msra.mxu0 %v1316
    %1351 = vmatprep.subr.mxu0 0.0
    %1352 = vmatpush1.msra.mxu0 %v1315
    %1353 = vmatprep.subr.mxu0 0.0
    %1354 = vmatpush2.msra.mxu0 0.0
    %1355 = vmatprep.subr.mxu0 0.0
    %1356 = vmatpush2.msra.mxu0 0.0
    %1357 = vmatprep.subr.mxu0 0.0
    %1358 = vmatpush2.msra.mxu0 0.0
    %1359 = vmatprep.subr.mxu0 0.0
    %1360 = vmatpush2.msra.mxu0 0.0
    %1361 = vmatprep.subr.mxu0 0.0
    %1362 = vmatpush2.msra.mxu0 0.0
    %1363 = vmatprep.subr.mxu0 0.0
    %1364 = vmatpush2.msra.mxu0 0.0
    %1365 = vmatprep.subr.mxu0 0.0
    %1366 = vmatpush2.msra.mxu0 0.0
    %1367 = vmatprep.subr.mxu0 0.0
    %1368 = vmatpush2.msra.mxu0 0.0
    %1369 = vmatprep.subr.mxu0 0.0
    %1370 = vmatpush2.msra.mxu0 0.0
    %1371 = vmatprep.subr.mxu0 0.0
    %1372 = vmatpush2.msra.mxu0 0.0
    %1373 = vmatprep.subr.mxu0 0.0
    %1374 = vmatpush2.msra.mxu0 0.0
    %1375 = vmatprep.subr.mxu0 0.0
    %1376 = vmatpush2.msra.mxu0 0.0
    %1377 = vmatprep.subr.mxu0 0.0
    %1378 = vmatpush2.msra.mxu0 0.0
    %1379 = vmatprep.subr.mxu0 0.0
    %1380 = vmatpush2.msra.mxu0 0.0
    %1381 = vmatprep.subr.mxu0 0.0
    %1382 = vmatpush2.msra.mxu0 0.0
    %1383 = vmatprep.subr.mxu0 0.0
    %1384 = vmatpush2.msra.mxu0 0.0
    %1385 = vmatprep.mubr.f32.mxu0 0.0
    %1386 = vmatmul.mubr.f32.gmra.mxu0 %v1204
    %v1387 = vpop.f32.mrf.mxu0
    %v1388 = vadd.f32 %v1196, %v1387
    %v1389 = vpop.f32.mrf.mxu0
    %1390 = vdwg.mxu0
    %v1392 = vrot.slane %v1388, 7
    %v1394 = vsel %vm1276, -inf, %v1392
    %v1395 = vrot.slane %v1283, 7
    %1396 = vrot.lane.b32.xlu0 %v1395, 96
    %v1397 = vpop.permute.xlu0 %1396
    %v1399 = vsub.f32 %v50, %v1397
    %1400 = vrot.lane.b32.xlu0 %v1155, 80
    %v1401 = vpop.permute.xlu0 %1400
    %1402 = vrot.lane.b32.xlu0 %v1156, 80
    %v1403 = vpop.permute.xlu0 %1402
    %1404 = vrot.lane.b32.xlu0 %v1157, 80
    %v1405 = vpop.permute.xlu0 %1404
    %1406 = vrot.lane.b32.xlu0 %v1158, 80
    %v1407 = vpop.permute.xlu0 %1406
    %1408 = vrot.lane.b32.xlu0 %v863, 80
    %v1409 = vpop.permute.xlu0 %1408
    %1410 = vrot.lane.b32.xlu0 %v868, 80
    %v1411 = vpop.permute.xlu0 %1410
    %v1418 = vsub.f32 %v1155, %v1401
    %v1419 = vsub.f32 %v1156, %v1403
    %v1420 = vsub.f32 %v1157, %v1405
    %v1421 = vsub.f32 %v1158, %v1407
    %v1422 = vsub.f32 %v863, %v1409
    %v1423 = vsub.f32 %v868, %v1411
    %v1424 = vand.u32 2147483647, %v1418
    %v1425 = vand.u32 2147483647, %v1419
    %v1426 = vand.u32 2147483647, %v1420
    %v1427 = vand.u32 2147483647, %v1421
    %v1428 = vand.u32 2147483647, %v1422
    %v1429 = vand.u32 2147483647, %v1423
    %1430 = vmatprep.subr.mxu0 0.0
    %1431 = vmatpush1.msra.mxu0 0.0
    %1432 = vmatprep.subr.mxu0 0.0
    %1433 = vmatpush1.msra.mxu0 0.0
    %1434 = vmatprep.subr.mxu0 0.0
    %1435 = vmatpush1.msra.mxu0 0.0
    %1436 = vmatprep.subr.mxu0 0.0
    %1437 = vmatpush1.msra.mxu0 0.0
    %1438 = vmatprep.subr.mxu0 0.0
    %1439 = vmatpush1.msra.mxu0 0.0
    %1440 = vmatprep.subr.mxu0 0.0
    %1441 = vmatpush1.msra.mxu0 0.0
    %1442 = vmatprep.subr.mxu0 0.0
    %1443 = vmatpush1.msra.mxu0 0.0
    %1444 = vmatprep.subr.mxu0 0.0
    %1445 = vmatpush1.msra.mxu0 0.0
    %1446 = vmatprep.subr.mxu0 0.0
    %1447 = vmatpush1.msra.mxu0 0.0
    %1448 = vmatprep.subr.mxu0 0.0
    %1449 = vmatpush1.msra.mxu0 0.0
    %1450 = vmatprep.subr.mxu0 0.0
    %1451 = vmatpush1.msra.mxu0 %v1429
    %1452 = vmatprep.subr.mxu0 0.0
    %1453 = vmatpush1.msra.mxu0 %v1428
    %1454 = vmatprep.subr.mxu0 0.0
    %1455 = vmatpush1.msra.mxu0 %v1427
    %1456 = vmatprep.subr.mxu0 0.0
    %1457 = vmatpush1.msra.mxu0 %v1426
    %1458 = vmatprep.subr.mxu0 0.0
    %1459 = vmatpush1.msra.mxu0 %v1425
    %1460 = vmatprep.subr.mxu0 0.0
    %1461 = vmatpush1.msra.mxu0 %v1424
    %1462 = vmatprep.subr.mxu0 0.0
    %1463 = vmatpush2.msra.mxu0 0.0
    %1464 = vmatprep.subr.mxu0 0.0
    %1465 = vmatpush2.msra.mxu0 0.0
    %1466 = vmatprep.subr.mxu0 0.0
    %1467 = vmatpush2.msra.mxu0 0.0
    %1468 = vmatprep.subr.mxu0 0.0
    %1469 = vmatpush2.msra.mxu0 0.0
    %1470 = vmatprep.subr.mxu0 0.0
    %1471 = vmatpush2.msra.mxu0 0.0
    %1472 = vmatprep.subr.mxu0 0.0
    %1473 = vmatpush2.msra.mxu0 0.0
    %1474 = vmatprep.subr.mxu0 0.0
    %1475 = vmatpush2.msra.mxu0 0.0
    %1476 = vmatprep.subr.mxu0 0.0
    %1477 = vmatpush2.msra.mxu0 0.0
    %1478 = vmatprep.subr.mxu0 0.0
    %1479 = vmatpush2.msra.mxu0 0.0
    %1480 = vmatprep.subr.mxu0 0.0
    %1481 = vmatpush2.msra.mxu0 0.0
    %1482 = vmatprep.subr.mxu0 0.0
    %1483 = vmatpush2.msra.mxu0 0.0
    %1484 = vmatprep.subr.mxu0 0.0
    %1485 = vmatpush2.msra.mxu0 0.0
    %1486 = vmatprep.subr.mxu0 0.0
    %1487 = vmatpush2.msra.mxu0 0.0
    %1488 = vmatprep.subr.mxu0 0.0
    %1489 = vmatpush2.msra.mxu0 0.0
    %1490 = vmatprep.subr.mxu0 0.0
    %1491 = vmatpush2.msra.mxu0 0.0
    %1492 = vmatprep.subr.mxu0 0.0
    %1493 = vmatpush2.msra.mxu0 0.0
    %1494 = vmatprep.mubr.f32.mxu0 0.0
    %1495 = vmatmul.mubr.f32.gmra.mxu0 %v1204
    %v1496 = vpop.f32.mrf.mxu0
    %v1497 = vadd.f32 %v1196, %v1496
    %v1498 = vpop.f32.mrf.mxu0
    %1499 = vdwg.mxu0
    %v1501 = vrot.slane %v1497, 6
    %v1503 = vsel %vm1276, -inf, %v1501
    %v1504 = vrot.slane %v1283, 6
    %1505 = vrot.lane.b32.xlu0 %v1504, 80
    %v1506 = vpop.permute.xlu0 %1505
    %v1508 = vsub.f32 %v50, %v1506
    %1509 = vrot.lane.b32.xlu0 %v1155, 64
    %v1510 = vpop.permute.xlu0 %1509
    %1511 = vrot.lane.b32.xlu0 %v1156, 64
    %v1512 = vpop.permute.xlu0 %1511
    %1513 = vrot.lane.b32.xlu0 %v1157, 64
    %v1514 = vpop.permute.xlu0 %1513
    %1515 = vrot.lane.b32.xlu0 %v1158, 64
    %v1516 = vpop.permute.xlu0 %1515
    %1517 = vrot.lane.b32.xlu0 %v863, 64
    %v1518 = vpop.permute.xlu0 %1517
    %1519 = vrot.lane.b32.xlu0 %v868, 64
    %v1520 = vpop.permute.xlu0 %1519
    %v1527 = vsub.f32 %v1155, %v1510
    %v1528 = vsub.f32 %v1156, %v1512
    %v1529 = vsub.f32 %v1157, %v1514
    %v1530 = vsub.f32 %v1158, %v1516
    %v1531 = vsub.f32 %v863, %v1518
    %v1532 = vsub.f32 %v868, %v1520
    %v1533 = vand.u32 2147483647, %v1527
    %v1534 = vand.u32 2147483647, %v1528
    %v1535 = vand.u32 2147483647, %v1529
    %v1536 = vand.u32 2147483647, %v1530
    %v1537 = vand.u32 2147483647, %v1531
    %v1538 = vand.u32 2147483647, %v1532
    %1539 = vmatprep.subr.mxu0 0.0
    %1540 = vmatpush1.msra.mxu0 0.0
    %1541 = vmatprep.subr.mxu0 0.0
    %1542 = vmatpush1.msra.mxu0 0.0
    %1543 = vmatprep.subr.mxu0 0.0
    %1544 = vmatpush1.msra.mxu0 0.0
    %1545 = vmatprep.subr.mxu0 0.0
    %1546 = vmatpush1.msra.mxu0 0.0
    %1547 = vmatprep.subr.mxu0 0.0
    %1548 = vmatpush1.msra.mxu0 0.0
    %1549 = vmatprep.subr.mxu0 0.0
    %1550 = vmatpush1.msra.mxu0 0.0
    %1551 = vmatprep.subr.mxu0 0.0
    %1552 = vmatpush1.msra.mxu0 0.0
    %1553 = vmatprep.subr.mxu0 0.0
    %1554 = vmatpush1.msra.mxu0 0.0
    %1555 = vmatprep.subr.mxu0 0.0
    %1556 = vmatpush1.msra.mxu0 0.0
    %1557 = vmatprep.subr.mxu0 0.0
    %1558 = vmatpush1.msra.mxu0 0.0
    %1559 = vmatprep.subr.mxu0 0.0
    %1560 = vmatpush1.msra.mxu0 %v1538
    %1561 = vmatprep.subr.mxu0 0.0
    %1562 = vmatpush1.msra.mxu0 %v1537
    %1563 = vmatprep.subr.mxu0 0.0
    %1564 = vmatpush1.msra.mxu0 %v1536
    %1565 = vmatprep.subr.mxu0 0.0
    %1566 = vmatpush1.msra.mxu0 %v1535
    %1567 = vmatprep.subr.mxu0 0.0
    %1568 = vmatpush1.msra.mxu0 %v1534
    %1569 = vmatprep.subr.mxu0 0.0
    %1570 = vmatpush1.msra.mxu0 %v1533
    %1571 = vmatprep.subr.mxu0 0.0
    %1572 = vmatpush2.msra.mxu0 0.0
    %1573 = vmatprep.subr.mxu0 0.0
    %1574 = vmatpush2.msra.mxu0 0.0
    %1575 = vmatprep.subr.mxu0 0.0
    %1576 = vmatpush2.msra.mxu0 0.0
    %1577 = vmatprep.subr.mxu0 0.0
    %1578 = vmatpush2.msra.mxu0 0.0
    %1579 = vmatprep.subr.mxu0 0.0
    %1580 = vmatpush2.msra.mxu0 0.0
    %1581 = vmatprep.subr.mxu0 0.0
    %1582 = vmatpush2.msra.mxu0 0.0
    %1583 = vmatprep.subr.mxu0 0.0
    %1584 = vmatpush2.msra.mxu0 0.0
    %1585 = vmatprep.subr.mxu0 0.0
    %1586 = vmatpush2.msra.mxu0 0.0
    %1587 = vmatprep.subr.mxu0 0.0
    %1588 = vmatpush2.msra.mxu0 0.0
    %1589 = vmatprep.subr.mxu0 0.0
    %1590 = vmatpush2.msra.mxu0 0.0
    %1591 = vmatprep.subr.mxu0 0.0
    %1592 = vmatpush2.msra.mxu0 0.0
    %1593 = vmatprep.subr.mxu0 0.0
    %1594 = vmatpush2.msra.mxu0 0.0
    %1595 = vmatprep.subr.mxu0 0.0
    %1596 = vmatpush2.msra.mxu0 0.0
    %1597 = vmatprep.subr.mxu0 0.0
    %1598 = vmatpush2.msra.mxu0 0.0
    %1599 = vmatprep.subr.mxu0 0.0
    %1600 = vmatpush2.msra.mxu0 0.0
    %1601 = vmatprep.subr.mxu0 0.0
    %1602 = vmatpush2.msra.mxu0 0.0
    %1603 = vmatprep.mubr.f32.mxu0 0.0
    %1604 = vmatmul.mubr.f32.gmra.mxu0 %v1204
    %v1605 = vpop.f32.mrf.mxu0
    %v1606 = vadd.f32 %v1196, %v1605
    %v1607 = vpop.f32.mrf.mxu0
    %1608 = vdwg.mxu0
    %v1610 = vrot.slane %v1606, 5
    %v1612 = vsel %vm1276, -inf, %v1610
    %v1613 = vrot.slane %v1283, 5
    %1614 = vrot.lane.b32.xlu0 %v1613, 64
    %v1615 = vpop.permute.xlu0 %1614
    %v1617 = vsub.f32 %v50, %v1615
    %1618 = vrot.lane.b32.xlu0 %v1155, 48
    %v1619 = vpop.permute.xlu0 %1618
    %1620 = vrot.lane.b32.xlu0 %v1156, 48
    %v1621 = vpop.permute.xlu0 %1620
    %1622 = vrot.lane.b32.xlu0 %v1157, 48
    %v1623 = vpop.permute.xlu0 %1622
    %1624 = vrot.lane.b32.xlu0 %v1158, 48
    %v1625 = vpop.permute.xlu0 %1624
    %1626 = vrot.lane.b32.xlu0 %v863, 48
    %v1627 = vpop.permute.xlu0 %1626
    %1628 = vrot.lane.b32.xlu0 %v868, 48
    %v1629 = vpop.permute.xlu0 %1628
    %v1636 = vsub.f32 %v1155, %v1619
    %v1637 = vsub.f32 %v1156, %v1621
    %v1638 = vsub.f32 %v1157, %v1623
    %v1639 = vsub.f32 %v1158, %v1625
    %v1640 = vsub.f32 %v863, %v1627
    %v1641 = vsub.f32 %v868, %v1629
    %v1642 = vand.u32 2147483647, %v1636
    %v1643 = vand.u32 2147483647, %v1637
    %v1644 = vand.u32 2147483647, %v1638
    %v1645 = vand.u32 2147483647, %v1639
    %v1646 = vand.u32 2147483647, %v1640
    %v1647 = vand.u32 2147483647, %v1641
    %1648 = vmatprep.subr.mxu0 0.0
    %1649 = vmatpush1.msra.mxu0 0.0
    %1650 = vmatprep.subr.mxu0 0.0
    %1651 = vmatpush1.msra.mxu0 0.0
    %1652 = vmatprep.subr.mxu0 0.0
    %1653 = vmatpush1.msra.mxu0 0.0
    %1654 = vmatprep.subr.mxu0 0.0
    %1655 = vmatpush1.msra.mxu0 0.0
    %1656 = vmatprep.subr.mxu0 0.0
    %1657 = vmatpush1.msra.mxu0 0.0
    %1658 = vmatprep.subr.mxu0 0.0
    %1659 = vmatpush1.msra.mxu0 0.0
    %1660 = vmatprep.subr.mxu0 0.0
    %1661 = vmatpush1.msra.mxu0 0.0
    %1662 = vmatprep.subr.mxu0 0.0
    %1663 = vmatpush1.msra.mxu0 0.0
    %1664 = vmatprep.subr.mxu0 0.0
    %1665 = vmatpush1.msra.mxu0 0.0
    %1666 = vmatprep.subr.mxu0 0.0
    %1667 = vmatpush1.msra.mxu0 0.0
    %1668 = vmatprep.subr.mxu0 0.0
    %1669 = vmatpush1.msra.mxu0 %v1647
    %1670 = vmatprep.subr.mxu0 0.0
    %1671 = vmatpush1.msra.mxu0 %v1646
    %1672 = vmatprep.subr.mxu0 0.0
    %1673 = vmatpush1.msra.mxu0 %v1645
    %1674 = vmatprep.subr.mxu0 0.0
    %1675 = vmatpush1.msra.mxu0 %v1644
    %1676 = vmatprep.subr.mxu0 0.0
    %1677 = vmatpush1.msra.mxu0 %v1643
    %1678 = vmatprep.subr.mxu0 0.0
    %1679 = vmatpush1.msra.mxu0 %v1642
    %1680 = vmatprep.subr.mxu0 0.0
    %1681 = vmatpush2.msra.mxu0 0.0
    %1682 = vmatprep.subr.mxu0 0.0
    %1683 = vmatpush2.msra.mxu0 0.0
    %1684 = vmatprep.subr.mxu0 0.0
    %1685 = vmatpush2.msra.mxu0 0.0
    %1686 = vmatprep.subr.mxu0 0.0
    %1687 = vmatpush2.msra.mxu0 0.0
    %1688 = vmatprep.subr.mxu0 0.0
    %1689 = vmatpush2.msra.mxu0 0.0
    %1690 = vmatprep.subr.mxu0 0.0
    %1691 = vmatpush2.msra.mxu0 0.0
    %1692 = vmatprep.subr.mxu0 0.0
    %1693 = vmatpush2.msra.mxu0 0.0
    %1694 = vmatprep.subr.mxu0 0.0
    %1695 = vmatpush2.msra.mxu0 0.0
    %1696 = vmatprep.subr.mxu0 0.0
    %1697 = vmatpush2.msra.mxu0 0.0
    %1698 = vmatprep.subr.mxu0 0.0
    %1699 = vmatpush2.msra.mxu0 0.0
    %1700 = vmatprep.subr.mxu0 0.0
    %1701 = vmatpush2.msra.mxu0 0.0
    %1702 = vmatprep.subr.mxu0 0.0
    %1703 = vmatpush2.msra.mxu0 0.0
    %1704 = vmatprep.subr.mxu0 0.0
    %1705 = vmatpush2.msra.mxu0 0.0
    %1706 = vmatprep.subr.mxu0 0.0
    %1707 = vmatpush2.msra.mxu0 0.0
    %1708 = vmatprep.subr.mxu0 0.0
    %1709 = vmatpush2.msra.mxu0 0.0
    %1710 = vmatprep.subr.mxu0 0.0
    %1711 = vmatpush2.msra.mxu0 0.0
    %1712 = vmatprep.mubr.f32.mxu0 0.0
    %1713 = vmatmul.mubr.f32.gmra.mxu0 %v1204
    %v1714 = vpop.f32.mrf.mxu0
    %v1715 = vadd.f32 %v1196, %v1714
    %v1716 = vpop.f32.mrf.mxu0
    %1717 = vdwg.mxu0
    %v1719 = vrot.slane %v1715, 4
    %v1721 = vsel %vm1276, -inf, %v1719
    %v1722 = vrot.slane %v1283, 4
    %1723 = vrot.lane.b32.xlu0 %v1722, 48
    %v1724 = vpop.permute.xlu0 %1723
    %v1726 = vsub.f32 %v50, %v1724
    %v1728 = vrot.slane %v1394, 1
    %v1730 = vmax.f32 %v1277, %v1728
    %v1732 = vrot.slane %v1503, 2
    %v1734 = vmax.f32 %v1730, %v1732
    %v1736 = vrot.slane %v1612, 3
    %v1738 = vmax.f32 %v1734, %v1736
    %v1740 = vrot.slane %v1721, 4
    %v1742 = vmax.f32 %v1738, %v1740
    %v1743 = vsub.f32 %v1277, %v1742
    %v1744 = vmul.f32 %v1743, 1.442695
    %v1745 = vpow.pop %v1744
    %v1746 = vadd.f32 %v1745, 0.0
    %v1747 = vmul.f32 %v1288, %v1745
    %v1748 = vadd.f32 %v1747, 0.0
    %v1750 = vrot.slane %v1742, 7
    %v1752 = vsub.f32 %v1394, %v1750
    %v1753 = vmul.f32 %v1752, 1.442695
    %v1754 = vpow.pop %v1753
    %v1756 = vrot.slane %v1754, 1
    %v1758 = vadd.f32 %v1746, %v1756
    %v1759 = vmul.f32 %v1399, %v1754
    %v1761 = vrot.slane %v1759, 1
    %v1763 = vadd.f32 %v1748, %v1761
    %v1764 = vrot.slane %v1742, 6
    %v1766 = vsub.f32 %v1503, %v1764
    %v1767 = vmul.f32 %v1766, 1.442695
    %v1768 = vpow.pop %v1767
    %v1770 = vrot.slane %v1768, 2
    %v1772 = vadd.f32 %v1758, %v1770
    %v1773 = vmul.f32 %v1508, %v1768
    %v1775 = vrot.slane %v1773, 2
    %v1777 = vadd.f32 %v1763, %v1775
    %v1778 = vrot.slane %v1742, 5
    %v1780 = vsub.f32 %v1612, %v1778
    %v1781 = vmul.f32 %v1780, 1.442695
    %v1782 = vpow.pop %v1781
    %v1784 = vrot.slane %v1782, 3
    %v1786 = vadd.f32 %v1772, %v1784
    %v1787 = vmul.f32 %v1617, %v1782
    %v1789 = vrot.slane %v1787, 3
    %v1791 = vadd.f32 %v1777, %v1789
    %v1792 = vrot.slane %v1742, 4
    %v1794 = vsub.f32 %v1721, %v1792
    %v1795 = vmul.f32 %v1794, 1.442695
    %v1796 = vpow.pop %v1795
    %v1798 = vrot.slane %v1796, 4
    %v1800 = vadd.f32 %v1786, %v1798
    %v1801 = vmul.f32 %v1726, %v1796
    %v1803 = vrot.slane %v1801, 4
    %v1805 = vadd.f32 %v1791, %v1803
    %v1806 = vrcp.pop %v1800
    %v1807 = vmul.f32 %v1805, %v1806
    %v1808 = vrot.slane %v1290, 1
    %v1809 = vadd.s32 %v1290, %v1808
    %v1810 = vrot.slane %v1290, 2
    %v1811 = vadd.s32 %v1809, %v1810
    %v1812 = vrot.slane %v1290, 3
    %v1813 = vadd.s32 %v1811, %v1812
    %v1814 = vrot.slane %v1290, 4
    %v1815 = vadd.s32 %v1813, %v1814
    %vm1816 = vcmp.eq.s32.totalorder %v1815, 1
    %s1817 = sld [smem:[#allocation2 + $0x2]]
    %v1818 = vstv %s1817
    %v1819 = vsel %vm1816, %v1818, 0.0
    %s1820 = sld [smem:[#allocation2 + $0x7]]
    %v1821 = vstv %s1820
    %v1822 = vsel %vm1816, %v1821, 0.0
    %vm1823 = vcmp.eq.s32.totalorder %v1815, 2
    %s1824 = sld [smem:[#allocation2 + $0x3]]
    %v1825 = vstv %s1824
    %v1826 = vsel %vm1823, %v1825, %v1819
    %s1827 = sld [smem:[#allocation2 + $0x8]]
    %v1828 = vstv %s1827
    %v1829 = vsel %vm1823, %v1828, %v1822
    %vm1830 = vcmp.eq.s32.totalorder %v1815, 3
    %s1831 = sld [smem:[#allocation2 + $0x4]]
    %v1832 = vstv %s1831
    %v1833 = vsel %vm1830, %v1832, %v1826
    %s1834 = sld [smem:[#allocation2 + $0x9]]
    %v1835 = vstv %s1834
    %v1836 = vsel %vm1830, %v1835, %v1829
    %vm1837 = vcmp.eq.s32.totalorder %v1815, 4
    %s1838 = sld [smem:[#allocation2 + $0x5]]
    %v1839 = vstv %s1838
    %v1840 = vsel %vm1837, %v1839, %v1833
    %s1841 = sld [smem:[#allocation2 + $0xa]]
    %v1842 = vstv %s1841
    %v1843 = vsel %vm1837, %v1842, %v1836
    %vm1844 = vcmp.eq.s32.totalorder %v1815, 5
    %s1845 = sld [smem:[#allocation2 + $0x6]]
    %v1846 = vstv %s1845
    %v1847 = vsel %vm1844, %v1846, %v1840
    %s1848 = sld [smem:[#allocation2 + $0xb]]
    %v1849 = vstv %s1848
    %v1850 = vsel %vm1844, %v1849, %v1843
    %v1851 = vand.u32 2147483647, %v1847
    %v1852 = vmul.f32 %v1807, %v1851
    %v1853 = vadd.f32 %v1852, %v1850
    %v1854 = vadd.f32 %v1853, %v1027
    %vm1855 = vcmask 122880
    %1856 = vst.msk [vmem:[#allocation5] sm:$0x1] %vm1855, %v1854
    // Predicated region
    $region42: #{resus_forward.1} parent=1 // pred_check
      _
    $region43: #{resus_forward.1} parent=1 // pred_check_branch
      %1858 = sbr.rel (0) target = $region45
    $region44: #{resus_forward.1} parent=1 // pred_region
      %s1860 = ssub.s32 16, 16
      %1861 = vsyncadd [#allocation3], %s1860
      %s1863 = sshll.u32 [#allocation5], 4
      %s1864 = int_to_ptr.vmem [resolvable:$true] %s1863
      %1866 = dma.vmem_to_hbm [thread:$0]  %s1864, 16, %s9, [#allocation3]
    $region45: #{resus_forward.1} parent=1 // pred_fallthru
      _
    // Predicated region
    $region46: #{resus_forward.1} parent=1 // pred_check
      _
    $region47: #{resus_forward.1} parent=1 // pred_check_branch
      %1868 = sbr.rel (0) target = $region49
    $region48: #{resus_forward.1} parent=1 // pred_region
      %1869 = dma.done [#allocation3], 16
    $region49: #{resus_forward.1} parent=1 // pred_fallthru
      _
    %1870 = vsyncpa [#allocation3], 1
    %1871 = vsyncpa [#allocation4], 1

</llo_original>
